<compile_context>
chip_gen: v5e
topology: v5e:2x2
jax: 0.10.0
libtpu: 0.0.40
codegen_flags: <defaults>
</compile_context>

<pallas_src>
import math

import jax
import jax.numpy as jnp
from jax import lax
from jax.experimental import pallas as pl
from jax.experimental.pallas import tpu as pltpu

# ----- small DistilBERT-like config -----
VOCAB = 100
VOCAB_PAD = 128          # padded so the one-hot/gather K dim is 128-lane aligned
MAX_POS = 16
HIDDEN = 32
N_HEADS = 4
HEAD_DIM = HIDDEN // N_HEADS
FFN_DIM = 4 * HIDDEN
N_LAYERS = 2
N_CLASSES = 5
HEAD_PAD = 128           # lane-dense classifier output width
LN_EPS = 1e-12

# rows of the packed per-layer vector params (shape (N_LAYERS, 9, HIDDEN))
_BQ, _BK, _BV, _BO, _LN1G, _LN1B, _BFF2, _LN2G, _LN2B = range(9)


def _layer_norm(x, g, b):
    mu = jnp.mean(x, axis=-1, keepdims=True)
    var = jnp.mean((x - mu) ** 2, axis=-1, keepdims=True)
    return (x - mu) * lax.rsqrt(var + LN_EPS) * g + b


# ---------------- fused forward kernel (no grid: everything resident) ----------------
def _make_kernel(B, S):
    BS = B * S

    def kernel(ids_ref, pos_ref, bias_ref, wemb_ref, embln_ref,
               qkvo_ref, w1_ref, w2_ref, vecs_ref, b1_ref,
               headw_ref, headb_ref,
               out_ref, h_scr):
        # ---- embeddings: one-hot gather on MXU (+ pre-tiled pos emb) + embedding LN ----
        ids = ids_ref[...]                                             # (B*S, 1) int32
        iota = lax.broadcasted_iota(jnp.int32, (BS, VOCAB_PAD), 1)
        onehot = jnp.where(iota == ids, 1.0, 0.0).astype(jnp.bfloat16)
        tok = jnp.dot(onehot, wemb_ref[...],
                      preferred_element_type=jnp.float32)              # (B*S, H)
        emb = tok + pos_ref[...]                                       # pos pre-tiled (B*S,H)
        x = _layer_norm(emb, embln_ref[0:1, :], embln_ref[1:2, :])

        bias = bias_ref[...]                                           # (B*S, B*S) additive

        # ---- transformer layers: static loop, weights resident in VMEM ----
        for li in range(N_LAYERS):
            W = qkvo_ref[li]                                           # (H, 4H) bf16 q|k|v|o
            vecs = vecs_ref[li]                                        # (9, H)  f32

            xb = x.astype(jnp.bfloat16)
            qkvo = jnp.dot(xb, W, preferred_element_type=jnp.float32)  # (B*S, 4H)
            q = qkvo[:, 0 * HIDDEN:1 * HIDDEN] + vecs[_BQ:_BQ + 1, :]  # scale folded into Wq
            k = qkvo[:, 1 * HIDDEN:2 * HIDDEN] + vecs[_BK:_BK + 1, :]
            v = qkvo[:, 2 * HIDDEN:3 * HIDDEN] + vecs[_BV:_BV + 1, :]
            wo = W[:, 3 * HIDDEN:4 * HIDDEN]                           # (H, H) bf16

            heads = []
            for hi in range(N_HEADS):                                  # static per-head loop
                cs = slice(hi * HEAD_DIM, (hi + 1) * HEAD_DIM)
                s = jnp.einsum('qd,kd->qk', q[:, cs], k[:, cs],
                               preferred_element_type=jnp.float32) + bias   # (B*S, B*S)
                s = s - jnp.max(s, axis=-1, keepdims=True)
                p = jnp.exp(s)
                p = p * pl.reciprocal(jnp.sum(p, axis=-1, keepdims=True), approx=True)
                heads.append(jnp.dot(p, v[:, cs],
                                     preferred_element_type=jnp.float32))   # (B*S, hd)
            ctx = jnp.concatenate(heads, axis=-1)                      # (B*S, H) lane concat

            attn = jnp.dot(ctx.astype(jnp.bfloat16), wo,
                           preferred_element_type=jnp.float32) + vecs[_BO:_BO + 1, :]
            sa = _layer_norm(attn + x, vecs[_LN1G:_LN1G + 1, :], vecs[_LN1B:_LN1B + 1, :])

            h1 = jnp.dot(sa.astype(jnp.bfloat16), w1_ref[li],
                         preferred_element_type=jnp.float32) + b1_ref[li]    # (B*S, FFN)
            h1 = jax.nn.gelu(h1, approximate=True)                     # tanh-GELU (EUP)
            ff = jnp.dot(h1.astype(jnp.bfloat16), w2_ref[li],
                         preferred_element_type=jnp.float32) + vecs[_BFF2:_BFF2 + 1, :]
            x = _layer_norm(ff + sa, vecs[_LN2G:_LN2G + 1, :], vecs[_LN2B:_LN2B + 1, :])

        # ---- classifier head on CLS rows (strided read, lane-dense padded output) ----
        h_scr[...] = x                                                 # (B*S, H) f32
        cls = h_scr[pl.ds(0, B, stride=S), :]                          # (B, H): rows 0, S, ...
        out_ref[...] = (jnp.dot(cls.astype(jnp.bfloat16), headw_ref[...],
                                preferred_element_type=jnp.float32) + headb_ref[...])

    return kernel


def paper_classifier_forward(params, input_ids, attention_mask):
    B, S = input_ids.shape
    BS = B * S
    ids_flat = input_ids.reshape(BS, 1).astype(jnp.int32)

    # pre-tiled position embeddings (B*S, H)
    pos_tiled = jnp.tile(params["pos_emb"][:S, :], (B, 1)).astype(jnp.float32)

    # precomputed additive attention bias: key-padding mask + block-diagonal batch mask
    mask = attention_mask.astype(jnp.float32)                          # (B, S)
    key_bias = jnp.where(mask == 0.0, -1e9, 0.0)                       # (B_k, S_k)
    cross = jnp.where(jnp.arange(B)[:, None] == jnp.arange(B)[None, :], 0.0, -1e9)  # (B_q,B_k)
    bias4 = cross[:, None, :, None] + key_bias[None, None, :, :]       # (B_q, 1, B_k, S_k)
    bias = jnp.broadcast_to(bias4, (B, S, B, S)).reshape(BS, BS).astype(jnp.float32)

    out = pl.pallas_call(
        _make_kernel(B, S),
        out_shape=jax.ShapeDtypeStruct((B, HEAD_PAD), jnp.float32),
        scratch_shapes=[pltpu.VMEM((BS, HIDDEN), jnp.float32)],        # resident hidden state
    )(ids_flat, pos_tiled, bias,
      params["word_emb"], params["emb_ln"],
      params["qkvo_w"], params["ffn_w1"], params["ffn_w2"],
      params["vecs"], params["ffn_b1"],
      params["head_w"], params["head_b"])

    return out[:, :N_CLASSES]                                          # strip lane padding


# ---------------- parameters (deterministic synthetic init) ----------------
def init_params(key):
    keys = iter(jax.random.split(key, 3 + N_LAYERS * 6))
    scale = 1.0 / math.sqrt(HEAD_DIM)

    def dense(k, shape):
        return 0.02 * jax.random.normal(k, shape)                      # f32

    zeros_h = jnp.zeros((HIDDEN,), jnp.float32)
    ones_h = jnp.ones((HIDDEN,), jnp.float32)

    word_emb = jnp.zeros((VOCAB_PAD, HIDDEN), jnp.float32)
    word_emb = word_emb.at[:VOCAB].set(dense(next(keys), (VOCAB, HIDDEN))).astype(jnp.bfloat16)
    pos_emb = dense(next(keys), (MAX_POS, HIDDEN)).astype(jnp.float32)
    head_w = jnp.zeros((HIDDEN, HEAD_PAD), jnp.float32)
    head_w = head_w.at[:, :N_CLASSES].set(dense(next(keys), (HIDDEN, N_CLASSES)))
    head_w = head_w.astype(jnp.bfloat16)

    qkvo_w, ffn_w1, ffn_w2, vecs, ffn_b1 = [], [], [], [], []
    for _ in range(N_LAYERS):
        wq = dense(next(keys), (HIDDEN, HIDDEN)) * scale               # fold 1/sqrt(hd) in Wq
        wk = dense(next(keys), (HIDDEN, HIDDEN))
        wv = dense(next(keys), (HIDDEN, HIDDEN))
        wo = dense(next(keys), (HIDDEN, HIDDEN))
        qkvo_w.append(jnp.concatenate([wq, wk, wv, wo], axis=1).astype(jnp.bfloat16))
        ffn_w1.append(dense(next(keys), (HIDDEN, FFN_DIM)).astype(jnp.bfloat16))
        ffn_w2.append(dense(next(keys), (FFN_DIM, HIDDEN)).astype(jnp.bfloat16))
        vecs.append(jnp.stack([zeros_h * scale, zeros_h, zeros_h, zeros_h,  # bq bk bv bo
                               ones_h, zeros_h,                             # ln1 gamma/beta
                               zeros_h,                                     # ffn bias2
                               ones_h, zeros_h], axis=0))                   # ln2 gamma/beta
        ffn_b1.append(jnp.zeros((1, FFN_DIM), jnp.float32))

    return {
        "word_emb": word_emb,                                          # (128, H) bf16
        "pos_emb": pos_emb,                                            # (MAX_POS, H) f32
        "emb_ln": jnp.stack([ones_h, zeros_h], axis=0),                # (2, H) f32
        "qkvo_w": jnp.stack(qkvo_w, axis=0),                           # (L, H, 4H) bf16
        "ffn_w1": jnp.stack(ffn_w1, axis=0),                           # (L, H, FFN) bf16
        "ffn_w2": jnp.stack(ffn_w2, axis=0),                           # (L, FFN, H) bf16
        "vecs": jnp.stack(vecs, axis=0),                               # (L, 9, H) f32
        "ffn_b1": jnp.stack(ffn_b1, axis=0),                           # (L, 1, FFN) f32
        "head_w": head_w,                                              # (H, 128) bf16 padded
        "head_b": jnp.zeros((1, HEAD_PAD), jnp.float32),               # (1, 128) f32 padded
    }


if __name__ == "__main__":
    key = jax.random.PRNGKey(0)
    k_param, k_ids = jax.random.split(key)

    B, S = 2, 8
    input_ids = jax.random.randint(k_ids, (B, S), 0, VOCAB, dtype=jnp.int32)
    attention_mask = jnp.ones((B, S), jnp.int32)
    attention_mask = attention_mask.at[1, -2:].set(0)   # exercise key masking

    params = init_params(k_param)
    logits = paper_classifier_forward(params, input_ids, attention_mask)
    logits = jax.block_until_ready(logits)

    assert logits.shape == (B, N_CLASSES) and logits.dtype == jnp.float32
    assert bool(jnp.all(jnp.isfinite(logits)))
    print("KERNEL_OK")
</pallas_src>

<mosaic_0001>
module attributes {stable_mosaic.version = 11 : i64} {
  func.func @kernel(%arg0: memref<16x1xi32, #tpu.memory_space<vmem>>, %arg1: memref<16x32xf32, #tpu.memory_space<vmem>>, %arg2: memref<16x16xf32, #tpu.memory_space<vmem>>, %arg3: memref<128x32xbf16, #tpu.memory_space<vmem>>, %arg4: memref<2x32xf32, #tpu.memory_space<vmem>>, %arg5: memref<2x32x128xbf16, #tpu.memory_space<vmem>>, %arg6: memref<2x32x128xbf16, #tpu.memory_space<vmem>>, %arg7: memref<2x128x32xbf16, #tpu.memory_space<vmem>>, %arg8: memref<2x9x32xf32, #tpu.memory_space<vmem>>, %arg9: memref<2x1x128xf32, #tpu.memory_space<vmem>>, %arg10: memref<32x128xbf16, #tpu.memory_space<vmem>>, %arg11: memref<1x128xf32, #tpu.memory_space<vmem>>, %arg12: memref<2x128xf32, #tpu.memory_space<vmem>>, %arg13: memref<16x32xf32, #tpu.memory_space<vmem>>) attributes {dimension_semantics = [], scalar_prefetch = 0 : i64, scratch_operands = 1 : i64, tpu.core_type = #tpu.core_type<tc>} {
    %c0 = arith.constant 0 : index
    %c0_0 = arith.constant 0 : index
    %0 = vector.load %arg0[%c0, %c0_0] : memref<16x1xi32, #tpu.memory_space<vmem>>, vector<16x1xi32>
    %1 = tpu.iota {dimensions = array<i32: 1>} : vector<16x128xi32>
    %2 = vector.broadcast %0 : vector<16x1xi32> to vector<16x128xi32>
    %3 = arith.cmpi eq, %1, %2 : vector<16x128xi32>
    %cst = arith.constant 1.000000e+00 : f32
    %cst_1 = arith.constant 0.000000e+00 : f32
    %4 = vector.broadcast %cst : f32 to vector<16x128xf32>
    %5 = vector.broadcast %cst_1 : f32 to vector<16x128xf32>
    %6 = arith.select %3, %4, %5 : vector<16x128xi1>, vector<16x128xf32>
    %7 = arith.truncf %6 : vector<16x128xf32> to vector<16x128xbf16>
    %c0_2 = arith.constant 0 : index
    %c0_3 = arith.constant 0 : index
    %8 = vector.load %arg3[%c0_2, %c0_3] : memref<128x32xbf16, #tpu.memory_space<vmem>>, vector<128x32xbf16>
    %cst_4 = arith.constant dense<0.000000e+00> : vector<16x32xf32>
    %9 = tpu.matmul %7, %8, %cst_4 {dimension_numbers = #tpu.dot_dimension_numbers<[1], [0], [0], [1], [0, 0, 1, 1], [], []>} : vector<16x128xbf16>, vector<128x32xbf16>, vector<16x32xf32> -> vector<16x32xf32>
    %c0_5 = arith.constant 0 : index
    %c0_6 = arith.constant 0 : index
    %10 = vector.load %arg1[%c0_5, %c0_6] : memref<16x32xf32, #tpu.memory_space<vmem>>, vector<16x32xf32>
    %11 = arith.addf %9, %10 : vector<16x32xf32>
    %c0_7 = arith.constant 0 : index
    %c0_8 = arith.constant 0 : index
    %12 = vector.load %arg4[%c0_7, %c0_8] : memref<2x32xf32, #tpu.memory_space<vmem>>, vector<1x32xf32>
    %c1 = arith.constant 1 : index
    %c0_9 = arith.constant 0 : index
    %13 = vector.load %arg4[%c1, %c0_9] : memref<2x32xf32, #tpu.memory_space<vmem>>, vector<1x32xf32>
    %cst_10 = arith.constant dense<0.000000e+00> : vector<16xf32>
    %14 = vector.multi_reduction <add>, %11, %cst_10 [1] : vector<16x32xf32> to vector<16xf32>
    %15 = vector.shape_cast %14 : vector<16xf32> to vector<16x1xf32>
    %cst_11 = arith.constant 3.200000e+01 : f32
    %16 = vector.broadcast %cst_11 : f32 to vector<16x1xf32>
    %17 = arith.divf %15, %16 : vector<16x1xf32>
    %18 = vector.broadcast %17 : vector<16x1xf32> to vector<16x32xf32>
    %19 = arith.subf %11, %18 : vector<16x32xf32>
    %20 = arith.mulf %19, %19 : vector<16x32xf32>
    %cst_12 = arith.constant dense<0.000000e+00> : vector<16xf32>
    %21 = vector.multi_reduction <add>, %20, %cst_12 [1] : vector<16x32xf32> to vector<16xf32>
    %22 = vector.shape_cast %21 : vector<16xf32> to vector<16x1xf32>
    %cst_13 = arith.constant 3.200000e+01 : f32
    %23 = vector.broadcast %cst_13 : f32 to vector<16x1xf32>
    %24 = arith.divf %22, %23 : vector<16x1xf32>
    %25 = vector.broadcast %17 : vector<16x1xf32> to vector<16x32xf32>
    %26 = arith.subf %11, %25 : vector<16x32xf32>
    %cst_14 = arith.constant 9.99999996E-13 : f32
    %27 = vector.broadcast %cst_14 : f32 to vector<16x1xf32>
    %28 = arith.addf %24, %27 : vector<16x1xf32>
    %29 = math.rsqrt %28 : vector<16x1xf32>
    %30 = vector.broadcast %29 : vector<16x1xf32> to vector<16x32xf32>
    %31 = arith.mulf %26, %30 : vector<16x32xf32>
    %32 = vector.broadcast %12 : vector<1x32xf32> to vector<16x32xf32>
    %33 = arith.mulf %31, %32 : vector<16x32xf32>
    %34 = vector.broadcast %13 : vector<1x32xf32> to vector<16x32xf32>
    %35 = arith.addf %33, %34 : vector<16x32xf32>
    %c0_15 = arith.constant 0 : index
    %c0_16 = arith.constant 0 : index
    %36 = vector.load %arg2[%c0_15, %c0_16] : memref<16x16xf32, #tpu.memory_space<vmem>>, vector<16x16xf32>
    %c0_17 = arith.constant 0 : index
    %c0_18 = arith.constant 0 : index
    %c0_19 = arith.constant 0 : index
    %37 = vector.load %arg5[%c0_17, %c0_18, %c0_19] : memref<2x32x128xbf16, #tpu.memory_space<vmem>>, vector<1x32x128xbf16>
    %38 = vector.shape_cast %37 : vector<1x32x128xbf16> to vector<32x128xbf16>
    %c0_20 = arith.constant 0 : index
    %c0_21 = arith.constant 0 : index
    %c0_22 = arith.constant 0 : index
    %39 = vector.load %arg8[%c0_20, %c0_21, %c0_22] : memref<2x9x32xf32, #tpu.memory_space<vmem>>, vector<1x9x32xf32>
    %40 = vector.shape_cast %39 : vector<1x9x32xf32> to vector<9x32xf32>
    %41 = arith.truncf %35 : vector<16x32xf32> to vector<16x32xbf16>
    %cst_23 = arith.constant dense<0.000000e+00> : vector<16x128xf32>
    %42 = tpu.matmul %41, %38, %cst_23 {dimension_numbers = #tpu.dot_dimension_numbers<[1], [0], [0], [1], [0, 0, 1, 1], [], []>} : vector<16x32xbf16>, vector<32x128xbf16>, vector<16x128xf32> -> vector<16x128xf32>
    %43 = vector.extract_strided_slice %42 {offsets = [0, 0], sizes = [16, 32], strides = [1, 1]} : vector<16x128xf32> to vector<16x32xf32>
    %44 = vector.extract_strided_slice %40 {offsets = [0, 0], sizes = [1, 32], strides = [1, 1]} : vector<9x32xf32> to vector<1x32xf32>
    %45 = vector.broadcast %44 : vector<1x32xf32> to vector<16x32xf32>
    %46 = arith.addf %43, %45 : vector<16x32xf32>
    %47 = vector.extract_strided_slice %42 {offsets = [0, 32], sizes = [16, 32], strides = [1, 1]} : vector<16x128xf32> to vector<16x32xf32>
    %48 = vector.extract_strided_slice %40 {offsets = [1, 0], sizes = [1, 32], strides = [1, 1]} : vector<9x32xf32> to vector<1x32xf32>
    %49 = vector.broadcast %48 : vector<1x32xf32> to vector<16x32xf32>
    %50 = arith.addf %47, %49 : vector<16x32xf32>
    %51 = vector.extract_strided_slice %42 {offsets = [0, 64], sizes = [16, 32], strides = [1, 1]} : vector<16x128xf32> to vector<16x32xf32>
    %52 = vector.extract_strided_slice %40 {offsets = [2, 0], sizes = [1, 32], strides = [1, 1]} : vector<9x32xf32> to vector<1x32xf32>
    %53 = vector.broadcast %52 : vector<1x32xf32> to vector<16x32xf32>
    %54 = arith.addf %51, %53 : vector<16x32xf32>
    %55 = vector.extract_strided_slice %38 {offsets = [0, 96], sizes = [32, 32], strides = [1, 1]} : vector<32x128xbf16> to vector<32x32xbf16>
    %56 = vector.extract_strided_slice %46 {offsets = [0, 0], sizes = [16, 8], strides = [1, 1]} : vector<16x32xf32> to vector<16x8xf32>
    %57 = vector.extract_strided_slice %50 {offsets = [0, 0], sizes = [16, 8], strides = [1, 1]} : vector<16x32xf32> to vector<16x8xf32>
    "tpu.trace_start"() <{level = 10 : i32, message = "qd,kd->qk"}> : () -> ()
    %cst_24 = arith.constant dense<0.000000e+00> : vector<16x16xf32>
    %58 = tpu.matmul %56, %57, %cst_24 {dimension_numbers = #tpu.dot_dimension_numbers<[1], [1], [0], [0], [0, 0, 1, 0], [], []>} : vector<16x8xf32>, vector<16x8xf32>, vector<16x16xf32> -> vector<16x16xf32>
    "tpu.trace_stop"() : () -> ()
    %59 = arith.addf %58, %36 : vector<16x16xf32>
    %cst_25 = arith.constant dense<0xFF800000> : vector<16xf32>
    %60 = vector.multi_reduction <maximumf>, %59, %cst_25 [1] : vector<16x16xf32> to vector<16xf32>
    %61 = vector.shape_cast %60 : vector<16xf32> to vector<16x1xf32>
    %62 = vector.broadcast %61 : vector<16x1xf32> to vector<16x16xf32>
    %63 = arith.subf %59, %62 : vector<16x16xf32>
    %64 = math.exp %63 : vector<16x16xf32>
    %cst_26 = arith.constant dense<0.000000e+00> : vector<16xf32>
    %65 = vector.multi_reduction <add>, %64, %cst_26 [1] : vector<16x16xf32> to vector<16xf32>
    %66 = vector.shape_cast %65 : vector<16xf32> to vector<16x1xf32>
    %67 = tpu.reciprocal %66 {approx = true} : vector<16x1xf32> -> vector<16x1xf32>
    %68 = vector.broadcast %67 : vector<16x1xf32> to vector<16x16xf32>
    %69 = arith.mulf %64, %68 : vector<16x16xf32>
    %70 = vector.extract_strided_slice %54 {offsets = [0, 0], sizes = [16, 8], strides = [1, 1]} : vector<16x32xf32> to vector<16x8xf32>
    %cst_27 = arith.constant dense<0.000000e+00> : vector<16x8xf32>
    %71 = tpu.matmul %69, %70, %cst_27 {dimension_numbers = #tpu.dot_dimension_numbers<[1], [0], [0], [1], [0, 0, 1, 1], [], []>} : vector<16x16xf32>, vector<16x8xf32>, vector<16x8xf32> -> vector<16x8xf32>
    %72 = vector.extract_strided_slice %46 {offsets = [0, 8], sizes = [16, 8], strides = [1, 1]} : vector<16x32xf32> to vector<16x8xf32>
    %73 = vector.extract_strided_slice %50 {offsets = [0, 8], sizes = [16, 8], strides = [1, 1]} : vector<16x32xf32> to vector<16x8xf32>
    "tpu.trace_start"() <{level = 10 : i32, message = "qd,kd->qk"}> : () -> ()
    %cst_28 = arith.constant dense<0.000000e+00> : vector<16x16xf32>
    %74 = tpu.matmul %72, %73, %cst_28 {dimension_numbers = #tpu.dot_dimension_numbers<[1], [1], [0], [0], [0, 0, 1, 0], [], []>} : vector<16x8xf32>, vector<16x8xf32>, vector<16x16xf32> -> vector<16x16xf32>
    "tpu.trace_stop"() : () -> ()
    %75 = arith.addf %74, %36 : vector<16x16xf32>
    %cst_29 = arith.constant dense<0xFF800000> : vector<16xf32>
    %76 = vector.multi_reduction <maximumf>, %75, %cst_29 [1] : vector<16x16xf32> to vector<16xf32>
    %77 = vector.shape_cast %76 : vector<16xf32> to vector<16x1xf32>
    %78 = vector.broadcast %77 : vector<16x1xf32> to vector<16x16xf32>
    %79 = arith.subf %75, %78 : vector<16x16xf32>
    %80 = math.exp %79 : vector<16x16xf32>
    %cst_30 = arith.constant dense<0.000000e+00> : vector<16xf32>
    %81 = vector.multi_reduction <add>, %80, %cst_30 [1] : vector<16x16xf32> to vector<16xf32>
    %82 = vector.shape_cast %81 : vector<16xf32> to vector<16x1xf32>
    %83 = tpu.reciprocal %82 {approx = true} : vector<16x1xf32> -> vector<16x1xf32>
    %84 = vector.broadcast %83 : vector<16x1xf32> to vector<16x16xf32>
    %85 = arith.mulf %80, %84 : vector<16x16xf32>
    %86 = vector.extract_strided_slice %54 {offsets = [0, 8], sizes = [16, 8], strides = [1, 1]} : vector<16x32xf32> to vector<16x8xf32>
    %cst_31 = arith.constant dense<0.000000e+00> : vector<16x8xf32>
    %87 = tpu.matmul %85, %86, %cst_31 {dimension_numbers = #tpu.dot_dimension_numbers<[1], [0], [0], [1], [0, 0, 1, 1], [], []>} : vector<16x16xf32>, vector<16x8xf32>, vector<16x8xf32> -> vector<16x8xf32>
    %88 = vector.extract_strided_slice %46 {offsets = [0, 16], sizes = [16, 8], strides = [1, 1]} : vector<16x32xf32> to vector<16x8xf32>
    %89 = vector.extract_strided_slice %50 {offsets = [0, 16], sizes = [16, 8], strides = [1, 1]} : vector<16x32xf32> to vector<16x8xf32>
    "tpu.trace_start"() <{level = 10 : i32, message = "qd,kd->qk"}> : () -> ()
    %cst_32 = arith.constant dense<0.000000e+00> : vector<16x16xf32>
    %90 = tpu.matmul %88, %89, %cst_32 {dimension_numbers = #tpu.dot_dimension_numbers<[1], [1], [0], [0], [0, 0, 1, 0], [], []>} : vector<16x8xf32>, vector<16x8xf32>, vector<16x16xf32> -> vector<16x16xf32>
    "tpu.trace_stop"() : () -> ()
    %91 = arith.addf %90, %36 : vector<16x16xf32>
    %cst_33 = arith.constant dense<0xFF800000> : vector<16xf32>
    %92 = vector.multi_reduction <maximumf>, %91, %cst_33 [1] : vector<16x16xf32> to vector<16xf32>
    %93 = vector.shape_cast %92 : vector<16xf32> to vector<16x1xf32>
    %94 = vector.broadcast %93 : vector<16x1xf32> to vector<16x16xf32>
    %95 = arith.subf %91, %94 : vector<16x16xf32>
    %96 = math.exp %95 : vector<16x16xf32>
    %cst_34 = arith.constant dense<0.000000e+00> : vector<16xf32>
    %97 = vector.multi_reduction <add>, %96, %cst_34 [1] : vector<16x16xf32> to vector<16xf32>
    %98 = vector.shape_cast %97 : vector<16xf32> to vector<16x1xf32>
    %99 = tpu.reciprocal %98 {approx = true} : vector<16x1xf32> -> vector<16x1xf32>
    %100 = vector.broadcast %99 : vector<16x1xf32> to vector<16x16xf32>
    %101 = arith.mulf %96, %100 : vector<16x16xf32>
    %102 = vector.extract_strided_slice %54 {offsets = [0, 16], sizes = [16, 8], strides = [1, 1]} : vector<16x32xf32> to vector<16x8xf32>
    %cst_35 = arith.constant dense<0.000000e+00> : vector<16x8xf32>
    %103 = tpu.matmul %101, %102, %cst_35 {dimension_numbers = #tpu.dot_dimension_numbers<[1], [0], [0], [1], [0, 0, 1, 1], [], []>} : vector<16x16xf32>, vector<16x8xf32>, vector<16x8xf32> -> vector<16x8xf32>
    %104 = vector.extract_strided_slice %46 {offsets = [0, 24], sizes = [16, 8], strides = [1, 1]} : vector<16x32xf32> to vector<16x8xf32>
    %105 = vector.extract_strided_slice %50 {offsets = [0, 24], sizes = [16, 8], strides = [1, 1]} : vector<16x32xf32> to vector<16x8xf32>
    "tpu.trace_start"() <{level = 10 : i32, message = "qd,kd->qk"}> : () -> ()
    %cst_36 = arith.constant dense<0.000000e+00> : vector<16x16xf32>
    %106 = tpu.matmul %104, %105, %cst_36 {dimension_numbers = #tpu.dot_dimension_numbers<[1], [1], [0], [0], [0, 0, 1, 0], [], []>} : vector<16x8xf32>, vector<16x8xf32>, vector<16x16xf32> -> vector<16x16xf32>
    "tpu.trace_stop"() : () -> ()
    %107 = arith.addf %106, %36 : vector<16x16xf32>
    %cst_37 = arith.constant dense<0xFF800000> : vector<16xf32>
    %108 = vector.multi_reduction <maximumf>, %107, %cst_37 [1] : vector<16x16xf32> to vector<16xf32>
    %109 = vector.shape_cast %108 : vector<16xf32> to vector<16x1xf32>
    %110 = vector.broadcast %109 : vector<16x1xf32> to vector<16x16xf32>
    %111 = arith.subf %107, %110 : vector<16x16xf32>
    %112 = math.exp %111 : vector<16x16xf32>
    %cst_38 = arith.constant dense<0.000000e+00> : vector<16xf32>
    %113 = vector.multi_reduction <add>, %112, %cst_38 [1] : vector<16x16xf32> to vector<16xf32>
    %114 = vector.shape_cast %113 : vector<16xf32> to vector<16x1xf32>
    %115 = tpu.reciprocal %114 {approx = true} : vector<16x1xf32> -> vector<16x1xf32>
    %116 = vector.broadcast %115 : vector<16x1xf32> to vector<16x16xf32>
    %117 = arith.mulf %112, %116 : vector<16x16xf32>
    %118 = vector.extract_strided_slice %54 {offsets = [0, 24], sizes = [16, 8], strides = [1, 1]} : vector<16x32xf32> to vector<16x8xf32>
    %cst_39 = arith.constant dense<0.000000e+00> : vector<16x8xf32>
    %119 = tpu.matmul %117, %118, %cst_39 {dimension_numbers = #tpu.dot_dimension_numbers<[1], [0], [0], [1], [0, 0, 1, 1], [], []>} : vector<16x16xf32>, vector<16x8xf32>, vector<16x8xf32> -> vector<16x8xf32>
    %120 = tpu.concatenate %71, %87, %103, %119 in 1 : vector<16x8xf32>, vector<16x8xf32>, vector<16x8xf32>, vector<16x8xf32> -> vector<16x32xf32>
    %121 = arith.truncf %120 : vector<16x32xf32> to vector<16x32xbf16>
    %cst_40 = arith.constant dense<0.000000e+00> : vector<16x32xf32>
    %122 = tpu.matmul %121, %55, %cst_40 {dimension_numbers = #tpu.dot_dimension_numbers<[1], [0], [0], [1], [0, 0, 1, 1], [], []>} : vector<16x32xbf16>, vector<32x32xbf16>, vector<16x32xf32> -> vector<16x32xf32>
    %123 = vector.extract_strided_slice %40 {offsets = [3, 0], sizes = [1, 32], strides = [1, 1]} : vector<9x32xf32> to vector<1x32xf32>
    %124 = vector.broadcast %123 : vector<1x32xf32> to vector<16x32xf32>
    %125 = arith.addf %122, %124 : vector<16x32xf32>
    %126 = arith.addf %125, %35 : vector<16x32xf32>
    %127 = vector.extract_strided_slice %40 {offsets = [4, 0], sizes = [1, 32], strides = [1, 1]} : vector<9x32xf32> to vector<1x32xf32>
    %128 = vector.extract_strided_slice %40 {offsets = [5, 0], sizes = [1, 32], strides = [1, 1]} : vector<9x32xf32> to vector<1x32xf32>
    %cst_41 = arith.constant dense<0.000000e+00> : vector<16xf32>
    %129 = vector.multi_reduction <add>, %126, %cst_41 [1] : vector<16x32xf32> to vector<16xf32>
    %130 = vector.shape_cast %129 : vector<16xf32> to vector<16x1xf32>
    %cst_42 = arith.constant 3.200000e+01 : f32
    %131 = vector.broadcast %cst_42 : f32 to vector<16x1xf32>
    %132 = arith.divf %130, %131 : vector<16x1xf32>
    %133 = vector.broadcast %132 : vector<16x1xf32> to vector<16x32xf32>
    %134 = arith.subf %126, %133 : vector<16x32xf32>
    %135 = arith.mulf %134, %134 : vector<16x32xf32>
    %cst_43 = arith.constant dense<0.000000e+00> : vector<16xf32>
    %136 = vector.multi_reduction <add>, %135, %cst_43 [1] : vector<16x32xf32> to vector<16xf32>
    %137 = vector.shape_cast %136 : vector<16xf32> to vector<16x1xf32>
    %cst_44 = arith.constant 3.200000e+01 : f32
    %138 = vector.broadcast %cst_44 : f32 to vector<16x1xf32>
    %139 = arith.divf %137, %138 : vector<16x1xf32>
    %140 = vector.broadcast %132 : vector<16x1xf32> to vector<16x32xf32>
    %141 = arith.subf %126, %140 : vector<16x32xf32>
    %cst_45 = arith.constant 9.99999996E-13 : f32
    %142 = vector.broadcast %cst_45 : f32 to vector<16x1xf32>
    %143 = arith.addf %139, %142 : vector<16x1xf32>
    %144 = math.rsqrt %143 : vector<16x1xf32>
    %145 = vector.broadcast %144 : vector<16x1xf32> to vector<16x32xf32>
    %146 = arith.mulf %141, %145 : vector<16x32xf32>
    %147 = vector.broadcast %127 : vector<1x32xf32> to vector<16x32xf32>
    %148 = arith.mulf %146, %147 : vector<16x32xf32>
    %149 = vector.broadcast %128 : vector<1x32xf32> to vector<16x32xf32>
    %150 = arith.addf %148, %149 : vector<16x32xf32>
    %151 = arith.truncf %150 : vector<16x32xf32> to vector<16x32xbf16>
    %c0_46 = arith.constant 0 : index
    %c0_47 = arith.constant 0 : index
    %c0_48 = arith.constant 0 : index
    %152 = vector.load %arg6[%c0_46, %c0_47, %c0_48] : memref<2x32x128xbf16, #tpu.memory_space<vmem>>, vector<1x32x128xbf16>
    %153 = vector.shape_cast %152 : vector<1x32x128xbf16> to vector<32x128xbf16>
    %cst_49 = arith.constant dense<0.000000e+00> : vector<16x128xf32>
    %154 = tpu.matmul %151, %153, %cst_49 {dimension_numbers = #tpu.dot_dimension_numbers<[1], [0], [0], [1], [0, 0, 1, 1], [], []>} : vector<16x32xbf16>, vector<32x128xbf16>, vector<16x128xf32> -> vector<16x128xf32>
    %c0_50 = arith.constant 0 : index
    %c0_51 = arith.constant 0 : index
    %c0_52 = arith.constant 0 : index
    %155 = vector.load %arg9[%c0_50, %c0_51, %c0_52] : memref<2x1x128xf32, #tpu.memory_space<vmem>>, vector<1x1x128xf32>
    %156 = vector.shape_cast %155 : vector<1x1x128xf32> to vector<1x128xf32>
    %157 = vector.broadcast %156 : vector<1x128xf32> to vector<16x128xf32>
    %158 = arith.addf %154, %157 : vector<16x128xf32>
    %159 = arith.mulf %158, %158 : vector<16x128xf32>
    %160 = arith.mulf %158, %159 : vector<16x128xf32>
    %cst_53 = arith.constant 4.471500e-02 : f32
    %161 = vector.broadcast %cst_53 : f32 to vector<16x128xf32>
    %162 = arith.mulf %161, %160 : vector<16x128xf32>
    %163 = arith.addf %158, %162 : vector<16x128xf32>
    %cst_54 = arith.constant 0.797884583 : f32
    %164 = vector.broadcast %cst_54 : f32 to vector<16x128xf32>
    %165 = arith.mulf %164, %163 : vector<16x128xf32>
    %166 = math.tanh %165 : vector<16x128xf32>
    %cst_55 = arith.constant 1.000000e+00 : f32
    %167 = vector.broadcast %cst_55 : f32 to vector<16x128xf32>
    %168 = arith.addf %167, %166 : vector<16x128xf32>
    %cst_56 = arith.constant 5.000000e-01 : f32
    %169 = vector.broadcast %cst_56 : f32 to vector<16x128xf32>
    %170 = arith.mulf %169, %168 : vector<16x128xf32>
    %171 = arith.mulf %158, %170 : vector<16x128xf32>
    %172 = arith.truncf %171 : vector<16x128xf32> to vector<16x128xbf16>
    %c0_57 = arith.constant 0 : index
    %c0_58 = arith.constant 0 : index
    %c0_59 = arith.constant 0 : index
    %173 = vector.load %arg7[%c0_57, %c0_58, %c0_59] : memref<2x128x32xbf16, #tpu.memory_space<vmem>>, vector<1x128x32xbf16>
    %174 = vector.shape_cast %173 : vector<1x128x32xbf16> to vector<128x32xbf16>
    %cst_60 = arith.constant dense<0.000000e+00> : vector<16x32xf32>
    %175 = tpu.matmul %172, %174, %cst_60 {dimension_numbers = #tpu.dot_dimension_numbers<[1], [0], [0], [1], [0, 0, 1, 1], [], []>} : vector<16x128xbf16>, vector<128x32xbf16>, vector<16x32xf32> -> vector<16x32xf32>
    %176 = vector.extract_strided_slice %40 {offsets = [6, 0], sizes = [1, 32], strides = [1, 1]} : vector<9x32xf32> to vector<1x32xf32>
    %177 = vector.broadcast %176 : vector<1x32xf32> to vector<16x32xf32>
    %178 = arith.addf %175, %177 : vector<16x32xf32>
    %179 = arith.addf %178, %150 : vector<16x32xf32>
    %180 = vector.extract_strided_slice %40 {offsets = [7, 0], sizes = [1, 32], strides = [1, 1]} : vector<9x32xf32> to vector<1x32xf32>
    %181 = vector.extract_strided_slice %40 {offsets = [8, 0], sizes = [1, 32], strides = [1, 1]} : vector<9x32xf32> to vector<1x32xf32>
    %cst_61 = arith.constant dense<0.000000e+00> : vector<16xf32>
    %182 = vector.multi_reduction <add>, %179, %cst_61 [1] : vector<16x32xf32> to vector<16xf32>
    %183 = vector.shape_cast %182 : vector<16xf32> to vector<16x1xf32>
    %cst_62 = arith.constant 3.200000e+01 : f32
    %184 = vector.broadcast %cst_62 : f32 to vector<16x1xf32>
    %185 = arith.divf %183, %184 : vector<16x1xf32>
    %186 = vector.broadcast %185 : vector<16x1xf32> to vector<16x32xf32>
    %187 = arith.subf %179, %186 : vector<16x32xf32>
    %188 = arith.mulf %187, %187 : vector<16x32xf32>
    %cst_63 = arith.constant dense<0.000000e+00> : vector<16xf32>
    %189 = vector.multi_reduction <add>, %188, %cst_63 [1] : vector<16x32xf32> to vector<16xf32>
    %190 = vector.shape_cast %189 : vector<16xf32> to vector<16x1xf32>
    %cst_64 = arith.constant 3.200000e+01 : f32
    %191 = vector.broadcast %cst_64 : f32 to vector<16x1xf32>
    %192 = arith.divf %190, %191 : vector<16x1xf32>
    %193 = vector.broadcast %185 : vector<16x1xf32> to vector<16x32xf32>
    %194 = arith.subf %179, %193 : vector<16x32xf32>
    %cst_65 = arith.constant 9.99999996E-13 : f32
    %195 = vector.broadcast %cst_65 : f32 to vector<16x1xf32>
    %196 = arith.addf %192, %195 : vector<16x1xf32>
    %197 = math.rsqrt %196 : vector<16x1xf32>
    %198 = vector.broadcast %197 : vector<16x1xf32> to vector<16x32xf32>
    %199 = arith.mulf %194, %198 : vector<16x32xf32>
    %200 = vector.broadcast %180 : vector<1x32xf32> to vector<16x32xf32>
    %201 = arith.mulf %199, %200 : vector<16x32xf32>
    %202 = vector.broadcast %181 : vector<1x32xf32> to vector<16x32xf32>
    %203 = arith.addf %201, %202 : vector<16x32xf32>
    %c1_66 = arith.constant 1 : index
    %c0_67 = arith.constant 0 : index
    %c0_68 = arith.constant 0 : index
    %204 = vector.load %arg5[%c1_66, %c0_67, %c0_68] : memref<2x32x128xbf16, #tpu.memory_space<vmem>>, vector<1x32x128xbf16>
    %205 = vector.shape_cast %204 : vector<1x32x128xbf16> to vector<32x128xbf16>
    %c1_69 = arith.constant 1 : index
    %c0_70 = arith.constant 0 : index
    %c0_71 = arith.constant 0 : index
    %206 = vector.load %arg8[%c1_69, %c0_70, %c0_71] : memref<2x9x32xf32, #tpu.memory_space<vmem>>, vector<1x9x32xf32>
    %207 = vector.shape_cast %206 : vector<1x9x32xf32> to vector<9x32xf32>
    %208 = arith.truncf %203 : vector<16x32xf32> to vector<16x32xbf16>
    %cst_72 = arith.constant dense<0.000000e+00> : vector<16x128xf32>
    %209 = tpu.matmul %208, %205, %cst_72 {dimension_numbers = #tpu.dot_dimension_numbers<[1], [0], [0], [1], [0, 0, 1, 1], [], []>} : vector<16x32xbf16>, vector<32x128xbf16>, vector<16x128xf32> -> vector<16x128xf32>
    %210 = vector.extract_strided_slice %209 {offsets = [0, 0], sizes = [16, 32], strides = [1, 1]} : vector<16x128xf32> to vector<16x32xf32>
    %211 = vector.extract_strided_slice %207 {offsets = [0, 0], sizes = [1, 32], strides = [1, 1]} : vector<9x32xf32> to vector<1x32xf32>
    %212 = vector.broadcast %211 : vector<1x32xf32> to vector<16x32xf32>
    %213 = arith.addf %210, %212 : vector<16x32xf32>
    %214 = vector.extract_strided_slice %209 {offsets = [0, 32], sizes = [16, 32], strides = [1, 1]} : vector<16x128xf32> to vector<16x32xf32>
    %215 = vector.extract_strided_slice %207 {offsets = [1, 0], sizes = [1, 32], strides = [1, 1]} : vector<9x32xf32> to vector<1x32xf32>
    %216 = vector.broadcast %215 : vector<1x32xf32> to vector<16x32xf32>
    %217 = arith.addf %214, %216 : vector<16x32xf32>
    %218 = vector.extract_strided_slice %209 {offsets = [0, 64], sizes = [16, 32], strides = [1, 1]} : vector<16x128xf32> to vector<16x32xf32>
    %219 = vector.extract_strided_slice %207 {offsets = [2, 0], sizes = [1, 32], strides = [1, 1]} : vector<9x32xf32> to vector<1x32xf32>
    %220 = vector.broadcast %219 : vector<1x32xf32> to vector<16x32xf32>
    %221 = arith.addf %218, %220 : vector<16x32xf32>
    %222 = vector.extract_strided_slice %205 {offsets = [0, 96], sizes = [32, 32], strides = [1, 1]} : vector<32x128xbf16> to vector<32x32xbf16>
    %223 = vector.extract_strided_slice %213 {offsets = [0, 0], sizes = [16, 8], strides = [1, 1]} : vector<16x32xf32> to vector<16x8xf32>
    %224 = vector.extract_strided_slice %217 {offsets = [0, 0], sizes = [16, 8], strides = [1, 1]} : vector<16x32xf32> to vector<16x8xf32>
    "tpu.trace_start"() <{level = 10 : i32, message = "qd,kd->qk"}> : () -> ()
    %cst_73 = arith.constant dense<0.000000e+00> : vector<16x16xf32>
    %225 = tpu.matmul %223, %224, %cst_73 {dimension_numbers = #tpu.dot_dimension_numbers<[1], [1], [0], [0], [0, 0, 1, 0], [], []>} : vector<16x8xf32>, vector<16x8xf32>, vector<16x16xf32> -> vector<16x16xf32>
    "tpu.trace_stop"() : () -> ()
    %226 = arith.addf %225, %36 : vector<16x16xf32>
    %cst_74 = arith.constant dense<0xFF800000> : vector<16xf32>
    %227 = vector.multi_reduction <maximumf>, %226, %cst_74 [1] : vector<16x16xf32> to vector<16xf32>
    %228 = vector.shape_cast %227 : vector<16xf32> to vector<16x1xf32>
    %229 = vector.broadcast %228 : vector<16x1xf32> to vector<16x16xf32>
    %230 = arith.subf %226, %229 : vector<16x16xf32>
    %231 = math.exp %230 : vector<16x16xf32>
    %cst_75 = arith.constant dense<0.000000e+00> : vector<16xf32>
    %232 = vector.multi_reduction <add>, %231, %cst_75 [1] : vector<16x16xf32> to vector<16xf32>
    %233 = vector.shape_cast %232 : vector<16xf32> to vector<16x1xf32>
    %234 = tpu.reciprocal %233 {approx = true} : vector<16x1xf32> -> vector<16x1xf32>
    %235 = vector.broadcast %234 : vector<16x1xf32> to vector<16x16xf32>
    %236 = arith.mulf %231, %235 : vector<16x16xf32>
    %237 = vector.extract_strided_slice %221 {offsets = [0, 0], sizes = [16, 8], strides = [1, 1]} : vector<16x32xf32> to vector<16x8xf32>
    %cst_76 = arith.constant dense<0.000000e+00> : vector<16x8xf32>
    %238 = tpu.matmul %236, %237, %cst_76 {dimension_numbers = #tpu.dot_dimension_numbers<[1], [0], [0], [1], [0, 0, 1, 1], [], []>} : vector<16x16xf32>, vector<16x8xf32>, vector<16x8xf32> -> vector<16x8xf32>
    %239 = vector.extract_strided_slice %213 {offsets = [0, 8], sizes = [16, 8], strides = [1, 1]} : vector<16x32xf32> to vector<16x8xf32>
    %240 = vector.extract_strided_slice %217 {offsets = [0, 8], sizes = [16, 8], strides = [1, 1]} : vector<16x32xf32> to vector<16x8xf32>
    "tpu.trace_start"() <{level = 10 : i32, message = "qd,kd->qk"}> : () -> ()
    %cst_77 = arith.constant dense<0.000000e+00> : vector<16x16xf32>
    %241 = tpu.matmul %239, %240, %cst_77 {dimension_numbers = #tpu.dot_dimension_numbers<[1], [1], [0], [0], [0, 0, 1, 0], [], []>} : vector<16x8xf32>, vector<16x8xf32>, vector<16x16xf32> -> vector<16x16xf32>
    "tpu.trace_stop"() : () -> ()
    %242 = arith.addf %241, %36 : vector<16x16xf32>
    %cst_78 = arith.constant dense<0xFF800000> : vector<16xf32>
    %243 = vector.multi_reduction <maximumf>, %242, %cst_78 [1] : vector<16x16xf32> to vector<16xf32>
    %244 = vector.shape_cast %243 : vector<16xf32> to vector<16x1xf32>
    %245 = vector.broadcast %244 : vector<16x1xf32> to vector<16x16xf32>
    %246 = arith.subf %242, %245 : vector<16x16xf32>
    %247 = math.exp %246 : vector<16x16xf32>
    %cst_79 = arith.constant dense<0.000000e+00> : vector<16xf32>
    %248 = vector.multi_reduction <add>, %247, %cst_79 [1] : vector<16x16xf32> to vector<16xf32>
    %249 = vector.shape_cast %248 : vector<16xf32> to vector<16x1xf32>
    %250 = tpu.reciprocal %249 {approx = true} : vector<16x1xf32> -> vector<16x1xf32>
    %251 = vector.broadcast %250 : vector<16x1xf32> to vector<16x16xf32>
    %252 = arith.mulf %247, %251 : vector<16x16xf32>
    %253 = vector.extract_strided_slice %221 {offsets = [0, 8], sizes = [16, 8], strides = [1, 1]} : vector<16x32xf32> to vector<16x8xf32>
    %cst_80 = arith.constant dense<0.000000e+00> : vector<16x8xf32>
    %254 = tpu.matmul %252, %253, %cst_80 {dimension_numbers = #tpu.dot_dimension_numbers<[1], [0], [0], [1], [0, 0, 1, 1], [], []>} : vector<16x16xf32>, vector<16x8xf32>, vector<16x8xf32> -> vector<16x8xf32>
    %255 = vector.extract_strided_slice %213 {offsets = [0, 16], sizes = [16, 8], strides = [1, 1]} : vector<16x32xf32> to vector<16x8xf32>
    %256 = vector.extract_strided_slice %217 {offsets = [0, 16], sizes = [16, 8], strides = [1, 1]} : vector<16x32xf32> to vector<16x8xf32>
    "tpu.trace_start"() <{level = 10 : i32, message = "qd,kd->qk"}> : () -> ()
    %cst_81 = arith.constant dense<0.000000e+00> : vector<16x16xf32>
    %257 = tpu.matmul %255, %256, %cst_81 {dimension_numbers = #tpu.dot_dimension_numbers<[1], [1], [0], [0], [0, 0, 1, 0], [], []>} : vector<16x8xf32>, vector<16x8xf32>, vector<16x16xf32> -> vector<16x16xf32>
    "tpu.trace_stop"() : () -> ()
    %258 = arith.addf %257, %36 : vector<16x16xf32>
    %cst_82 = arith.constant dense<0xFF800000> : vector<16xf32>
    %259 = vector.multi_reduction <maximumf>, %258, %cst_82 [1] : vector<16x16xf32> to vector<16xf32>
    %260 = vector.shape_cast %259 : vector<16xf32> to vector<16x1xf32>
    %261 = vector.broadcast %260 : vector<16x1xf32> to vector<16x16xf32>
    %262 = arith.subf %258, %261 : vector<16x16xf32>
    %263 = math.exp %262 : vector<16x16xf32>
    %cst_83 = arith.constant dense<0.000000e+00> : vector<16xf32>
    %264 = vector.multi_reduction <add>, %263, %cst_83 [1] : vector<16x16xf32> to vector<16xf32>
    %265 = vector.shape_cast %264 : vector<16xf32> to vector<16x1xf32>
    %266 = tpu.reciprocal %265 {approx = true} : vector<16x1xf32> -> vector<16x1xf32>
    %267 = vector.broadcast %266 : vector<16x1xf32> to vector<16x16xf32>
    %268 = arith.mulf %263, %267 : vector<16x16xf32>
    %269 = vector.extract_strided_slice %221 {offsets = [0, 16], sizes = [16, 8], strides = [1, 1]} : vector<16x32xf32> to vector<16x8xf32>
    %cst_84 = arith.constant dense<0.000000e+00> : vector<16x8xf32>
    %270 = tpu.matmul %268, %269, %cst_84 {dimension_numbers = #tpu.dot_dimension_numbers<[1], [0], [0], [1], [0, 0, 1, 1], [], []>} : vector<16x16xf32>, vector<16x8xf32>, vector<16x8xf32> -> vector<16x8xf32>
    %271 = vector.extract_strided_slice %213 {offsets = [0, 24], sizes = [16, 8], strides = [1, 1]} : vector<16x32xf32> to vector<16x8xf32>
    %272 = vector.extract_strided_slice %217 {offsets = [0, 24], sizes = [16, 8], strides = [1, 1]} : vector<16x32xf32> to vector<16x8xf32>
    "tpu.trace_start"() <{level = 10 : i32, message = "qd,kd->qk"}> : () -> ()
    %cst_85 = arith.constant dense<0.000000e+00> : vector<16x16xf32>
    %273 = tpu.matmul %271, %272, %cst_85 {dimension_numbers = #tpu.dot_dimension_numbers<[1], [1], [0], [0], [0, 0, 1, 0], [], []>} : vector<16x8xf32>, vector<16x8xf32>, vector<16x16xf32> -> vector<16x16xf32>
    "tpu.trace_stop"() : () -> ()
    %274 = arith.addf %273, %36 : vector<16x16xf32>
    %cst_86 = arith.constant dense<0xFF800000> : vector<16xf32>
    %275 = vector.multi_reduction <maximumf>, %274, %cst_86 [1] : vector<16x16xf32> to vector<16xf32>
    %276 = vector.shape_cast %275 : vector<16xf32> to vector<16x1xf32>
    %277 = vector.broadcast %276 : vector<16x1xf32> to vector<16x16xf32>
    %278 = arith.subf %274, %277 : vector<16x16xf32>
    %279 = math.exp %278 : vector<16x16xf32>
    %cst_87 = arith.constant dense<0.000000e+00> : vector<16xf32>
    %280 = vector.multi_reduction <add>, %279, %cst_87 [1] : vector<16x16xf32> to vector<16xf32>
    %281 = vector.shape_cast %280 : vector<16xf32> to vector<16x1xf32>
    %282 = tpu.reciprocal %281 {approx = true} : vector<16x1xf32> -> vector<16x1xf32>
    %283 = vector.broadcast %282 : vector<16x1xf32> to vector<16x16xf32>
    %284 = arith.mulf %279, %283 : vector<16x16xf32>
    %285 = vector.extract_strided_slice %221 {offsets = [0, 24], sizes = [16, 8], strides = [1, 1]} : vector<16x32xf32> to vector<16x8xf32>
    %cst_88 = arith.constant dense<0.000000e+00> : vector<16x8xf32>
    %286 = tpu.matmul %284, %285, %cst_88 {dimension_numbers = #tpu.dot_dimension_numbers<[1], [0], [0], [1], [0, 0, 1, 1], [], []>} : vector<16x16xf32>, vector<16x8xf32>, vector<16x8xf32> -> vector<16x8xf32>
    %287 = tpu.concatenate %238, %254, %270, %286 in 1 : vector<16x8xf32>, vector<16x8xf32>, vector<16x8xf32>, vector<16x8xf32> -> vector<16x32xf32>
    %288 = arith.truncf %287 : vector<16x32xf32> to vector<16x32xbf16>
    %cst_89 = arith.constant dense<0.000000e+00> : vector<16x32xf32>
    %289 = tpu.matmul %288, %222, %cst_89 {dimension_numbers = #tpu.dot_dimension_numbers<[1], [0], [0], [1], [0, 0, 1, 1], [], []>} : vector<16x32xbf16>, vector<32x32xbf16>, vector<16x32xf32> -> vector<16x32xf32>
    %290 = vector.extract_strided_slice %207 {offsets = [3, 0], sizes = [1, 32], strides = [1, 1]} : vector<9x32xf32> to vector<1x32xf32>
    %291 = vector.broadcast %290 : vector<1x32xf32> to vector<16x32xf32>
    %292 = arith.addf %289, %291 : vector<16x32xf32>
    %293 = arith.addf %292, %203 : vector<16x32xf32>
    %294 = vector.extract_strided_slice %207 {offsets = [4, 0], sizes = [1, 32], strides = [1, 1]} : vector<9x32xf32> to vector<1x32xf32>
    %295 = vector.extract_strided_slice %207 {offsets = [5, 0], sizes = [1, 32], strides = [1, 1]} : vector<9x32xf32> to vector<1x32xf32>
    %cst_90 = arith.constant dense<0.000000e+00> : vector<16xf32>
    %296 = vector.multi_reduction <add>, %293, %cst_90 [1] : vector<16x32xf32> to vector<16xf32>
    %297 = vector.shape_cast %296 : vector<16xf32> to vector<16x1xf32>
    %cst_91 = arith.constant 3.200000e+01 : f32
    %298 = vector.broadcast %cst_91 : f32 to vector<16x1xf32>
    %299 = arith.divf %297, %298 : vector<16x1xf32>
    %300 = vector.broadcast %299 : vector<16x1xf32> to vector<16x32xf32>
    %301 = arith.subf %293, %300 : vector<16x32xf32>
    %302 = arith.mulf %301, %301 : vector<16x32xf32>
    %cst_92 = arith.constant dense<0.000000e+00> : vector<16xf32>
    %303 = vector.multi_reduction <add>, %302, %cst_92 [1] : vector<16x32xf32> to vector<16xf32>
    %304 = vector.shape_cast %303 : vector<16xf32> to vector<16x1xf32>
    %cst_93 = arith.constant 3.200000e+01 : f32
    %305 = vector.broadcast %cst_93 : f32 to vector<16x1xf32>
    %306 = arith.divf %304, %305 : vector<16x1xf32>
    %307 = vector.broadcast %299 : vector<16x1xf32> to vector<16x32xf32>
    %308 = arith.subf %293, %307 : vector<16x32xf32>
    %cst_94 = arith.constant 9.99999996E-13 : f32
    %309 = vector.broadcast %cst_94 : f32 to vector<16x1xf32>
    %310 = arith.addf %306, %309 : vector<16x1xf32>
    %311 = math.rsqrt %310 : vector<16x1xf32>
    %312 = vector.broadcast %311 : vector<16x1xf32> to vector<16x32xf32>
    %313 = arith.mulf %308, %312 : vector<16x32xf32>
    %314 = vector.broadcast %294 : vector<1x32xf32> to vector<16x32xf32>
    %315 = arith.mulf %313, %314 : vector<16x32xf32>
    %316 = vector.broadcast %295 : vector<1x32xf32> to vector<16x32xf32>
    %317 = arith.addf %315, %316 : vector<16x32xf32>
    %318 = arith.truncf %317 : vector<16x32xf32> to vector<16x32xbf16>
    %c1_95 = arith.constant 1 : index
    %c0_96 = arith.constant 0 : index
    %c0_97 = arith.constant 0 : index
    %319 = vector.load %arg6[%c1_95, %c0_96, %c0_97] : memref<2x32x128xbf16, #tpu.memory_space<vmem>>, vector<1x32x128xbf16>
    %320 = vector.shape_cast %319 : vector<1x32x128xbf16> to vector<32x128xbf16>
    %cst_98 = arith.constant dense<0.000000e+00> : vector<16x128xf32>
    %321 = tpu.matmul %318, %320, %cst_98 {dimension_numbers = #tpu.dot_dimension_numbers<[1], [0], [0], [1], [0, 0, 1, 1], [], []>} : vector<16x32xbf16>, vector<32x128xbf16>, vector<16x128xf32> -> vector<16x128xf32>
    %c1_99 = arith.constant 1 : index
    %c0_100 = arith.constant 0 : index
    %c0_101 = arith.constant 0 : index
    %322 = vector.load %arg9[%c1_99, %c0_100, %c0_101] : memref<2x1x128xf32, #tpu.memory_space<vmem>>, vector<1x1x128xf32>
    %323 = vector.shape_cast %322 : vector<1x1x128xf32> to vector<1x128xf32>
    %324 = vector.broadcast %323 : vector<1x128xf32> to vector<16x128xf32>
    %325 = arith.addf %321, %324 : vector<16x128xf32>
    %326 = arith.mulf %325, %325 : vector<16x128xf32>
    %327 = arith.mulf %325, %326 : vector<16x128xf32>
    %cst_102 = arith.constant 4.471500e-02 : f32
    %328 = vector.broadcast %cst_102 : f32 to vector<16x128xf32>
    %329 = arith.mulf %328, %327 : vector<16x128xf32>
    %330 = arith.addf %325, %329 : vector<16x128xf32>
    %cst_103 = arith.constant 0.797884583 : f32
    %331 = vector.broadcast %cst_103 : f32 to vector<16x128xf32>
    %332 = arith.mulf %331, %330 : vector<16x128xf32>
    %333 = math.tanh %332 : vector<16x128xf32>
    %cst_104 = arith.constant 1.000000e+00 : f32
    %334 = vector.broadcast %cst_104 : f32 to vector<16x128xf32>
    %335 = arith.addf %334, %333 : vector<16x128xf32>
    %cst_105 = arith.constant 5.000000e-01 : f32
    %336 = vector.broadcast %cst_105 : f32 to vector<16x128xf32>
    %337 = arith.mulf %336, %335 : vector<16x128xf32>
    %338 = arith.mulf %325, %337 : vector<16x128xf32>
    %339 = arith.truncf %338 : vector<16x128xf32> to vector<16x128xbf16>
    %c1_106 = arith.constant 1 : index
    %c0_107 = arith.constant 0 : index
    %c0_108 = arith.constant 0 : index
    %340 = vector.load %arg7[%c1_106, %c0_107, %c0_108] : memref<2x128x32xbf16, #tpu.memory_space<vmem>>, vector<1x128x32xbf16>
    %341 = vector.shape_cast %340 : vector<1x128x32xbf16> to vector<128x32xbf16>
    %cst_109 = arith.constant dense<0.000000e+00> : vector<16x32xf32>
    %342 = tpu.matmul %339, %341, %cst_109 {dimension_numbers = #tpu.dot_dimension_numbers<[1], [0], [0], [1], [0, 0, 1, 1], [], []>} : vector<16x128xbf16>, vector<128x32xbf16>, vector<16x32xf32> -> vector<16x32xf32>
    %343 = vector.extract_strided_slice %207 {offsets = [6, 0], sizes = [1, 32], strides = [1, 1]} : vector<9x32xf32> to vector<1x32xf32>
    %344 = vector.broadcast %343 : vector<1x32xf32> to vector<16x32xf32>
    %345 = arith.addf %342, %344 : vector<16x32xf32>
    %346 = arith.addf %345, %317 : vector<16x32xf32>
    %347 = vector.extract_strided_slice %207 {offsets = [7, 0], sizes = [1, 32], strides = [1, 1]} : vector<9x32xf32> to vector<1x32xf32>
    %348 = vector.extract_strided_slice %207 {offsets = [8, 0], sizes = [1, 32], strides = [1, 1]} : vector<9x32xf32> to vector<1x32xf32>
    %cst_110 = arith.constant dense<0.000000e+00> : vector<16xf32>
    %349 = vector.multi_reduction <add>, %346, %cst_110 [1] : vector<16x32xf32> to vector<16xf32>
    %350 = vector.shape_cast %349 : vector<16xf32> to vector<16x1xf32>
    %cst_111 = arith.constant 3.200000e+01 : f32
    %351 = vector.broadcast %cst_111 : f32 to vector<16x1xf32>
    %352 = arith.divf %350, %351 : vector<16x1xf32>
    %353 = vector.broadcast %352 : vector<16x1xf32> to vector<16x32xf32>
    %354 = arith.subf %346, %353 : vector<16x32xf32>
    %355 = arith.mulf %354, %354 : vector<16x32xf32>
    %cst_112 = arith.constant dense<0.000000e+00> : vector<16xf32>
    %356 = vector.multi_reduction <add>, %355, %cst_112 [1] : vector<16x32xf32> to vector<16xf32>
    %357 = vector.shape_cast %356 : vector<16xf32> to vector<16x1xf32>
    %cst_113 = arith.constant 3.200000e+01 : f32
    %358 = vector.broadcast %cst_113 : f32 to vector<16x1xf32>
    %359 = arith.divf %357, %358 : vector<16x1xf32>
    %360 = vector.broadcast %352 : vector<16x1xf32> to vector<16x32xf32>
    %361 = arith.subf %346, %360 : vector<16x32xf32>
    %cst_114 = arith.constant 9.99999996E-13 : f32
    %362 = vector.broadcast %cst_114 : f32 to vector<16x1xf32>
    %363 = arith.addf %359, %362 : vector<16x1xf32>
    %364 = math.rsqrt %363 : vector<16x1xf32>
    %365 = vector.broadcast %364 : vector<16x1xf32> to vector<16x32xf32>
    %366 = arith.mulf %361, %365 : vector<16x32xf32>
    %367 = vector.broadcast %347 : vector<1x32xf32> to vector<16x32xf32>
    %368 = arith.mulf %366, %367 : vector<16x32xf32>
    %369 = vector.broadcast %348 : vector<1x32xf32> to vector<16x32xf32>
    %370 = arith.addf %368, %369 : vector<16x32xf32>
    %c0_115 = arith.constant 0 : index
    %c0_116 = arith.constant 0 : index
    %371 = vector.load %arg13[%c0_115, %c0_116] : memref<16x32xf32, #tpu.memory_space<vmem>>, vector<16x32xf32>
    tpu.vector_store %arg13[%c0_115, %c0_116], %370 {strides = array<i32>} : memref<16x32xf32, #tpu.memory_space<vmem>>, vector<16x32xf32>,
    %c0_117 = arith.constant 0 : index
    %c0_118 = arith.constant 0 : index
    %372 = tpu.strided_load %arg13[%c0_117, %c0_118] {strides = array<i32: 8, 1>} : memref<16x32xf32, #tpu.memory_space<vmem>>, vector<2x32xf32>
    %373 = arith.truncf %372 : vector<2x32xf32> to vector<2x32xbf16>
    %c0_119 = arith.constant 0 : index
    %c0_120 = arith.constant 0 : index
    %374 = vector.load %arg10[%c0_119, %c0_120] : memref<32x128xbf16, #tpu.memory_space<vmem>>, vector<32x128xbf16>
    %cst_121 = arith.constant dense<0.000000e+00> : vector<2x128xf32>
    %375 = tpu.matmul %373, %374, %cst_121 {dimension_numbers = #tpu.dot_dimension_numbers<[1], [0], [0], [1], [0, 0, 1, 1], [], []>} : vector<2x32xbf16>, vector<32x128xbf16>, vector<2x128xf32> -> vector<2x128xf32>
    %c0_122 = arith.constant 0 : index
    %c0_123 = arith.constant 0 : index
    %376 = vector.load %arg11[%c0_122, %c0_123] : memref<1x128xf32, #tpu.memory_space<vmem>>, vector<1x128xf32>
    %377 = vector.broadcast %376 : vector<1x128xf32> to vector<2x128xf32>
    %378 = arith.addf %375, %377 : vector<2x128xf32>
    %c0_124 = arith.constant 0 : index
    %c0_125 = arith.constant 0 : index
    %379 = vector.load %arg12[%c0_124, %c0_125] : memref<2x128xf32, #tpu.memory_space<vmem>>, vector<2x128xf32>
    tpu.vector_store %arg12[%c0_124, %c0_125], %378 {strides = array<i32>} : memref<2x128xf32, #tpu.memory_space<vmem>>, vector<2x128xf32>,
    return
  }
}

</mosaic_0001>

<llo_original>
// kernel: tpu_custom_call.1
$region0: #{tpu_custom_call.1}
  #allocation0 [shape = 'u32[]', space=smem, size = 0x4, offset = 0x4, fixed_abs, tag = 'smem constant byte address 0x4 - core index']
  #allocation1 [shape = 'u32[72,128]{1,0:T(1,128)}', space=vmem, size = 0x9000, scoped, tag = 'internal scratch']
  #allocation2 [shape = 'f32[16,32]{1,0:T(8,128)}', space=vmem, size = 0x2000, scoped, tag = 'scratch operand']
  %s0 = inlined_call_operand.vmem [shape: s32[16,1], index: 0, kind: input, shape index: {}]
  %s1 = inlined_call_operand.vmem [shape: f32[16,32], index: 1, kind: input, shape index: {}]
  %s2 = inlined_call_operand.vmem [shape: f32[16,16], index: 2, kind: input, shape index: {}]
  %s3 = inlined_call_operand.vmem [shape: bf16[128,32], index: 3, kind: input, shape index: {}]
  %s4 = inlined_call_operand.vmem [shape: f32[2,32], index: 4, kind: input, shape index: {}]
  %s5 = inlined_call_operand.vmem [shape: bf16[2,32,128], index: 5, kind: input, shape index: {}]
  %s6 = inlined_call_operand.vmem [shape: bf16[2,32,128], index: 6, kind: input, shape index: {}]
  %s7 = inlined_call_operand.vmem [shape: bf16[2,128,32], index: 7, kind: input, shape index: {}]
  %s8 = inlined_call_operand.vmem [shape: f32[2,9,32], index: 8, kind: input, shape index: {}]
  %s9 = inlined_call_operand.vmem [shape: f32[2,1,128], index: 9, kind: input, shape index: {}]
  %s10 = inlined_call_operand.vmem [shape: bf16[32,128], index: 10, kind: input, shape index: {}]
  %s11 = inlined_call_operand.vmem [shape: f32[1,128], index: 11, kind: input, shape index: {}]
  %s12 = inlined_call_operand.hbm [shape: f32[2,128], index: 12, kind: output, shape index: {}]
  %s13 = sld [smem:[#allocation0]]
  $region58: #{tpu_custom_call.1} parent=0
    _
  %s15 = ssub.s32 1, %s13
  %s16 = scalar_select 0, %s15, %s13
  $region1: #{tpu_custom_call.1} parent=0
    #allocation3 [shape = 'u8[1024]{0}', space=vmem, size = 0x400, scoped, tag = 'output window, operand 0, single buffered']
    #allocation4 [shape = 's32[1]{0}', space=sflag, size = 0x4, scoped, tag = 'scoped memory for tpu_custom_call.1']
    %17 = vsyncpa [#allocation4], 0
    // Predicated region
    $region2: #{tpu_custom_call.1} parent=1 // pred_check
      _
    $region3: #{tpu_custom_call.1} parent=1 // pred_check_branch
      %19 = sbr.rel (0) target = $region5
    $region4: #{tpu_custom_call.1} parent=1 // pred_region
      _
    $region5: #{tpu_custom_call.1} parent=1 // pred_fallthru
      _
    // Predicated region
    $region6: #{tpu_custom_call.1} parent=1 // pred_check
      _
    $region7: #{tpu_custom_call.1} parent=1 // pred_check_branch
      %21 = sbr.rel (0) target = $region9
    $region8: #{tpu_custom_call.1} parent=1 // pred_region
      _
    $region9: #{tpu_custom_call.1} parent=1 // pred_fallthru
      _
    // Predicated region
    $region10: #{tpu_custom_call.1} parent=1 // pred_check
      _
    $region11: #{tpu_custom_call.1} parent=1 // pred_check_branch
      %23 = sbr.rel (0) target = $region13
    $region12: #{tpu_custom_call.1} parent=1 // pred_region
      _
    $region13: #{tpu_custom_call.1} parent=1 // pred_fallthru
      _
    // Predicated region
    $region14: #{tpu_custom_call.1} parent=1 // pred_check
      _
    $region15: #{tpu_custom_call.1} parent=1 // pred_check_branch
      %25 = sbr.rel (0) target = $region17
    $region16: #{tpu_custom_call.1} parent=1 // pred_region
      _
    $region17: #{tpu_custom_call.1} parent=1 // pred_fallthru
      _
    // Predicated region
    $region18: #{tpu_custom_call.1} parent=1 // pred_check
      _
    $region19: #{tpu_custom_call.1} parent=1 // pred_check_branch
      %27 = sbr.rel (0) target = $region21
    $region20: #{tpu_custom_call.1} parent=1 // pred_region
      _
    $region21: #{tpu_custom_call.1} parent=1 // pred_fallthru
      _
    // Predicated region
    $region22: #{tpu_custom_call.1} parent=1 // pred_check
      _
    $region23: #{tpu_custom_call.1} parent=1 // pred_check_branch
      %29 = sbr.rel (0) target = $region25
    $region24: #{tpu_custom_call.1} parent=1 // pred_region
      _
    $region25: #{tpu_custom_call.1} parent=1 // pred_fallthru
      _
    // Predicated region
    $region26: #{tpu_custom_call.1} parent=1 // pred_check
      _
    $region27: #{tpu_custom_call.1} parent=1 // pred_check_branch
      %31 = sbr.rel (0) target = $region29
    $region28: #{tpu_custom_call.1} parent=1 // pred_region
      _
    $region29: #{tpu_custom_call.1} parent=1 // pred_fallthru
      _
    // Predicated region
    $region30: #{tpu_custom_call.1} parent=1 // pred_check
      _
    $region31: #{tpu_custom_call.1} parent=1 // pred_check_branch
      %33 = sbr.rel (0) target = $region33
    $region32: #{tpu_custom_call.1} parent=1 // pred_region
      _
    $region33: #{tpu_custom_call.1} parent=1 // pred_fallthru
      _
    // Predicated region
    $region34: #{tpu_custom_call.1} parent=1 // pred_check
      _
    $region35: #{tpu_custom_call.1} parent=1 // pred_check_branch
      %35 = sbr.rel (0) target = $region37
    $region36: #{tpu_custom_call.1} parent=1 // pred_region
      _
    $region37: #{tpu_custom_call.1} parent=1 // pred_fallthru
      _
    // Predicated region
    $region38: #{tpu_custom_call.1} parent=1 // pred_check
      _
    $region39: #{tpu_custom_call.1} parent=1 // pred_check_branch
      %37 = sbr.rel (0) target = $region41
    $region40: #{tpu_custom_call.1} parent=1 // pred_region
      _
    $region41: #{tpu_custom_call.1} parent=1 // pred_fallthru
      _
    // Predicated region
    $region42: #{tpu_custom_call.1} parent=1 // pred_check
      _
    $region43: #{tpu_custom_call.1} parent=1 // pred_check_branch
      %39 = sbr.rel (0) target = $region45
    $region44: #{tpu_custom_call.1} parent=1 // pred_region
      _
    $region45: #{tpu_custom_call.1} parent=1 // pred_fallthru
      _
    // Predicated region
    $region46: #{tpu_custom_call.1} parent=1 // pred_check
      _
    $region47: #{tpu_custom_call.1} parent=1 // pred_check_branch
      %41 = sbr.rel (0) target = $region49
    $region48: #{tpu_custom_call.1} parent=1 // pred_region
      _
    $region49: #{tpu_custom_call.1} parent=1 // pred_fallthru
      _
    %v43 = vld [vmem:[%s0] sm:$0xff]
    %v44 = vld [vmem:[%s0 + $0x8] sm:$0xff]
    %v45 = vlaneseq
    %v46 = vand.u32 %v45, 127
    %47 = vset.pattern.permute.xlu0 0
    %48 = vperm.xlu0 %47, %v43
    %v49 = vpop.permute.xlu0 %48
    %50 = vset.pattern.permute.xlu0 0
    %51 = vperm.xlu0 %50, %v44
    %v52 = vpop.permute.xlu0 %51
    %vm53 = vcmp.eq.s32.totalorder %v46, %v49
    %vm54 = vcmp.eq.s32.totalorder %v46, %v52
    %v55 = vsel %vm53, 1.0, 0.0
    %v56 = vsel %vm54, 1.0, 0.0
    %v57 = vpack.c.bf16 %v56, %v55
    %v58 = vld [vmem:[%s3] sm:$0xf]
    %v59 = vld [vmem:[%s3 + $0x4] sm:$0xf]
    %v60 = vld [vmem:[%s3 + $0x8] sm:$0xf]
    %v61 = vld [vmem:[%s3 + $0xc] sm:$0xf]
    %v62 = vld [vmem:[%s3 + $0x10] sm:$0xf]
    %v63 = vld [vmem:[%s3 + $0x14] sm:$0xf]
    %v64 = vld [vmem:[%s3 + $0x18] sm:$0xf]
    %v65 = vld [vmem:[%s3 + $0x1c] sm:$0xf]
    %v66 = vld [vmem:[%s3 + $0x20] sm:$0xf]
    %v67 = vld [vmem:[%s3 + $0x24] sm:$0xf]
    %v68 = vld [vmem:[%s3 + $0x28] sm:$0xf]
    %v69 = vld [vmem:[%s3 + $0x2c] sm:$0xf]
    %v70 = vld [vmem:[%s3 + $0x30] sm:$0xf]
    %v71 = vld [vmem:[%s3 + $0x34] sm:$0xf]
    %v72 = vld [vmem:[%s3 + $0x38] sm:$0xf]
    %v73 = vld [vmem:[%s3 + $0x3c] sm:$0xf]
    %v74 = vld [vmem:[%s1] sm:$0xff]
    %v75 = vld [vmem:[%s1 + $0x8] sm:$0xff]
    %v92 = vunpack.c.l.b16 %v58
    %v93 = vunpack.c.l.b16 %v59
    %v94 = vunpack.c.l.b16 %v60
    %v95 = vunpack.c.l.b16 %v61
    %v96 = vunpack.c.l.b16 %v62
    %v97 = vunpack.c.l.b16 %v63
    %v98 = vunpack.c.l.b16 %v64
    %v99 = vunpack.c.l.b16 %v65
    %v100 = vunpack.c.l.b16 %v66
    %v101 = vunpack.c.l.b16 %v67
    %v102 = vunpack.c.l.b16 %v68
    %v103 = vunpack.c.l.b16 %v69
    %v104 = vunpack.c.l.b16 %v70
    %v105 = vunpack.c.l.b16 %v71
    %v106 = vunpack.c.l.b16 %v72
    %v107 = vunpack.c.l.b16 %v73
    %v108 = vpack.c.b16 %v93, %v92
    %v109 = vpack.c.b16 %v95, %v94
    %v110 = vpack.c.b16 %v97, %v96
    %v111 = vpack.c.b16 %v99, %v98
    %v112 = vpack.c.b16 %v101, %v100
    %v113 = vpack.c.b16 %v103, %v102
    %v114 = vpack.c.b16 %v105, %v104
    %v115 = vpack.c.b16 %v107, %v106
    %124 = vmatpush.bf16.msra.mxu0 %v115
    %125 = vmatpush.bf16.msra.mxu0 %v114
    %126 = vmatpush.bf16.msra.mxu0 %v113
    %127 = vmatpush.bf16.msra.mxu0 %v112
    %128 = vmatpush.bf16.msra.mxu0 %v111
    %129 = vmatpush.bf16.msra.mxu0 %v110
    %130 = vmatpush.bf16.msra.mxu0 %v109
    %131 = vmatpush.bf16.msra.mxu0 %v108
    %132 = vmatmul.bf16.gmra.mxu0 %v57
    %v133 = vpop.f32.mrf.mxu0
    %v134 = vadd.f32 %v74, %v133
    %v135 = vpop.f32.mrf.mxu0
    %v136 = vadd.f32 %v75, %v135
    %137 = vdwg.mxu0
    %v138 = vld [vmem:[%s4] sm:$0x1]
    %v139 = vld [vmem:[%s4 + $0x1] sm:$0x1]
    %vm140 = vcmask 261120
    %v141 = vsel %vm140, %v134, 0.0
    %142 = vadd.xlane.f32.xlu0 %v141
    %v143 = vpop.xlane.xlu0 %142
    %v144 = vsel %vm140, %v136, 0.0
    %145 = vadd.xlane.f32.xlu0 %v144
    %v146 = vpop.xlane.xlu0 %145
    %v147 = vrcp.pop 32.0
    %v148 = vmul.f32 32.0, %v147
    %v149 = vsub.f32 1.0, %v148
    %v150 = vmul.f32 %v147, %v149
    %v151 = vadd.f32 %v147, %v150
    %vm152 = vweird.f32 %v147
    %v153 = vsel %vm152, %v147, %v151
    %v154 = vmul.f32 %v143, %v153
    %v155 = vmul.f32 %v146, %v153
    %v156 = vsub.f32 %v134, %v154
    %v157 = vsub.f32 %v136, %v155
    %v158 = vmul.f32 %v156, %v156
    %v159 = vmul.f32 %v157, %v157
    %v160 = vsel %vm140, %v158, 0.0
    %161 = vadd.xlane.f32.xlu0 %v160
    %v162 = vpop.xlane.xlu0 %161
    %v163 = vsel %vm140, %v159, 0.0
    %164 = vadd.xlane.f32.xlu0 %v163
    %v165 = vpop.xlane.xlu0 %164
    %v166 = vmul.f32 %v162, %v153
    %v167 = vmul.f32 %v165, %v153
    %v168 = vadd.f32 %v166, 1e-12
    %v169 = vadd.f32 %v167, 1e-12
    %v170 = vrsqrt.pop %v168
    %v171 = vmul.f32 %v170, %v168
    %v172 = vmul.f32 %v171, %v170
    %v173 = vmul.f32 0.5, %v172
    %v174 = vsub.f32 1.5, %v173
    %v175 = vmul.f32 %v170, %v174
    %vm176 = vweird.f32 %v168
    %vm177 = vweird.f32 %v170
    %vm178 = vmor %vm176, %vm177
    %v179 = vsel %vm178, %v170, %v175
    %v180 = vrsqrt.pop %v169
    %v181 = vmul.f32 %v180, %v169
    %v182 = vmul.f32 %v181, %v180
    %v183 = vmul.f32 0.5, %v182
    %v184 = vsub.f32 1.5, %v183
    %v185 = vmul.f32 %v180, %v184
    %vm186 = vweird.f32 %v169
    %vm187 = vweird.f32 %v180
    %vm188 = vmor %vm186, %vm187
    %v189 = vsel %vm188, %v180, %v185
    %v190 = vmul.f32 %v156, %v179
    %v191 = vmul.f32 %v157, %v189
    %v192 = vperm.slane %v138, 0
    %v193 = vmul.f32 %v190, %v192
    %v194 = vmul.f32 %v191, %v192
    %v195 = vperm.slane %v139, 0
    %v196 = vadd.f32 %v193, %v195
    %v197 = vadd.f32 %v194, %v195
    %v198 = vld [vmem:[%s2] sm:$0xff]
    %v199 = vld [vmem:[%s2 + $0x8] sm:$0xff]
    %v200 = vld [vmem:[%s5] sm:$0xf]
    %v201 = vld [vmem:[%s5 + $0x4] sm:$0xf]
    %v202 = vld [vmem:[%s5 + $0x8] sm:$0xf]
    %v203 = vld [vmem:[%s5 + $0xc] sm:$0xf]
    %v204 = vld [vmem:[%s8] sm:$0xff]
    %v205 = vld [vmem:[%s8 + $0x8] sm:$0x1]
    %v206 = vpack.c.bf16 %v197, %v196
    %v211 = vunpack.c.l.b16 %v200
    %v212 = vunpack.c.l.b16 %v201
    %v213 = vunpack.c.l.b16 %v202
    %v214 = vunpack.c.l.b16 %v203
    %v215 = vpack.c.b16 %v212, %v211
    %v216 = vpack.c.b16 %v214, %v213
    %v220 = vsel %vm140, %v206, 0
    %222 = vmatpush.bf16.msra.mxu0 0
    %223 = vmatpush.bf16.msra.mxu0 0
    %224 = vmatpush.bf16.msra.mxu0 0
    %225 = vmatpush.bf16.msra.mxu0 0
    %226 = vmatpush.bf16.msra.mxu0 0
    %227 = vmatpush.bf16.msra.mxu0 0
    %228 = vmatpush.bf16.msra.mxu0 %v216
    %229 = vmatpush.bf16.msra.mxu0 %v215
    %230 = vmatmul.bf16.gmra.mxu0 %v220
    %v231 = vpop.f32.mrf.mxu0
    %v232 = vadd.f32 0.0, %v231
    %v233 = vpop.f32.mrf.mxu0
    %v234 = vadd.f32 0.0, %v233
    %235 = vdwg.mxu0
    %v236 = vperm.slane %v204, 0
    %v237 = vadd.f32 %v232, %v236
    %v238 = vadd.f32 %v234, %v236
    %v239 = vperm.slane %v204, 1
    %241 = vrot.lane.b32.xlu0 %v239, 32
    %v242 = vpop.permute.xlu0 %241
    %v244 = vadd.f32 %v232, %v242
    %v245 = vadd.f32 %v234, %v242
    %v246 = vperm.slane %v204, 2
    %248 = vrot.lane.b32.xlu0 %v246, 64
    %v249 = vpop.permute.xlu0 %248
    %v251 = vadd.f32 %v232, %v249
    %v252 = vadd.f32 %v234, %v249
    %255 = vrot.lane.b32.xlu0 %v244, 96
    %v256 = vpop.permute.xlu0 %255
    %257 = vrot.lane.b32.xlu0 %v245, 96
    %v258 = vpop.permute.xlu0 %257
    %vm259 = vcmask 64512
    %v261 = vsel %vm259, %v237, 0
    %v264 = vsel %vm259, %v238, 0
    %v266 = vsel %vm259, %v256, 0
    %v268 = vsel %vm259, %v258, 0
    %270 = vmatpush.xpose.msra.mxu0 0.0
    %271 = vmatpush.xpose.msra.mxu0 0.0
    %272 = vmatpush.xpose.msra.mxu0 0.0
    %273 = vmatpush.xpose.msra.mxu0 0.0
    %274 = vmatpush.xpose.msra.mxu0 0.0
    %275 = vmatpush.xpose.msra.mxu0 0.0
    %276 = vmatpush.xpose.msra.mxu0 0.0
    %277 = vmatpush.xpose.msra.mxu0 0.0
    %278 = vmatpush.xpose.msra.mxu0 0.0
    %279 = vmatpush.xpose.msra.mxu0 0.0
    %280 = vmatpush.xpose.msra.mxu0 0.0
    %281 = vmatpush.xpose.msra.mxu0 0.0
    %282 = vmatpush.xpose.msra.mxu0 0.0
    %283 = vmatpush.xpose.msra.mxu0 0.0
    %284 = vmatpush.xpose.msra.mxu0 %v268
    %285 = vmatpush.xpose.msra.mxu0 %v266
    %286 = vmatmul.f32.gmra.mxu0 %v261
    %v287 = vpop.f32.mrf.mxu0
    %v288 = vadd.f32 %v198, %v287
    %289 = vmatmul.f32.gmra.mxu0 %v264
    %v290 = vpop.f32.mrf.mxu0
    %v291 = vadd.f32 %v199, %v290
    %292 = vdwg.mxu0
    %vm293 = vcmask 130048
    %v294 = vsel %vm293, %v288, -inf
    %295 = vmax.xlane.f32.xlu0 %v294
    %v296 = vpop.xlane.xlu0 %295
    %v297 = vsel %vm293, %v291, -inf
    %298 = vmax.xlane.f32.xlu0 %v297
    %v299 = vpop.xlane.xlu0 %298
    %v300 = vsub.f32 %v288, %v296
    %v301 = vsub.f32 %v291, %v299
    %v302 = vmul.f32 %v300, 1.442695
    %v303 = vpow.pop %v302
    %v304 = vmul.f32 %v301, 1.442695
    %v305 = vpow.pop %v304
    %v306 = vsel %vm293, %v303, 0.0
    %307 = vadd.xlane.f32.xlu0 %v306
    %v308 = vpop.xlane.xlu0 %307
    %v309 = vsel %vm293, %v305, 0.0
    %310 = vadd.xlane.f32.xlu0 %v309
    %v311 = vpop.xlane.xlu0 %310
    %v312 = vrcp.pop %v308
    %v313 = vrcp.pop %v311
    %v314 = vmul.f32 %v303, %v312
    %v315 = vmul.f32 %v305, %v313
    %318 = vrot.lane.b32.xlu0 %v251, 64
    %v319 = vpop.permute.xlu0 %318
    %320 = vrot.lane.b32.xlu0 %v252, 64
    %v321 = vpop.permute.xlu0 %320
    %v325 = vsel %vm293, %v314, 0
    %v328 = vsel %vm293, %v315, 0
    %330 = vmatpush.msra.mxu0 0.0
    %331 = vmatpush.msra.mxu0 0.0
    %332 = vmatpush.msra.mxu0 0.0
    %333 = vmatpush.msra.mxu0 0.0
    %334 = vmatpush.msra.mxu0 0.0
    %335 = vmatpush.msra.mxu0 0.0
    %336 = vmatpush.msra.mxu0 0.0
    %337 = vmatpush.msra.mxu0 0.0
    %338 = vmatpush.msra.mxu0 0.0
    %339 = vmatpush.msra.mxu0 0.0
    %340 = vmatpush.msra.mxu0 0.0
    %341 = vmatpush.msra.mxu0 0.0
    %342 = vmatpush.msra.mxu0 0.0
    %343 = vmatpush.msra.mxu0 0.0
    %344 = vmatpush.msra.mxu0 %v321
    %345 = vmatpush.msra.mxu0 %v319
    %346 = vmatmul.f32.gmra.mxu0 %v325
    %v347 = vpop.f32.mrf.mxu0
    %v348 = vadd.f32 0.0, %v347
    %349 = vmatmul.f32.gmra.mxu0 %v328
    %v350 = vpop.f32.mrf.mxu0
    %v351 = vadd.f32 0.0, %v350
    %352 = vdwg.mxu0
    %353 = vrot.lane.b32.xlu0 %v237, 120
    %v354 = vpop.permute.xlu0 %353
    %355 = vrot.lane.b32.xlu0 %v238, 120
    %v356 = vpop.permute.xlu0 %355
    %357 = vrot.lane.b32.xlu0 %v244, 88
    %v358 = vpop.permute.xlu0 %357
    %359 = vrot.lane.b32.xlu0 %v245, 88
    %v360 = vpop.permute.xlu0 %359
    %v361 = vsel %vm259, %v354, 0
    %v363 = vsel %vm259, %v356, 0
    %v365 = vsel %vm259, %v358, 0
    %v367 = vsel %vm259, %v360, 0
    %369 = vmatpush.xpose.msra.mxu0 0.0
    %370 = vmatpush.xpose.msra.mxu0 0.0
    %371 = vmatpush.xpose.msra.mxu0 0.0
    %372 = vmatpush.xpose.msra.mxu0 0.0
    %373 = vmatpush.xpose.msra.mxu0 0.0
    %374 = vmatpush.xpose.msra.mxu0 0.0
    %375 = vmatpush.xpose.msra.mxu0 0.0
    %376 = vmatpush.xpose.msra.mxu0 0.0
    %377 = vmatpush.xpose.msra.mxu0 0.0
    %378 = vmatpush.xpose.msra.mxu0 0.0
    %379 = vmatpush.xpose.msra.mxu0 0.0
    %380 = vmatpush.xpose.msra.mxu0 0.0
    %381 = vmatpush.xpose.msra.mxu0 0.0
    %382 = vmatpush.xpose.msra.mxu0 0.0
    %383 = vmatpush.xpose.msra.mxu0 %v367
    %384 = vmatpush.xpose.msra.mxu0 %v365
    %385 = vmatmul.f32.gmra.mxu0 %v361
    %v386 = vpop.f32.mrf.mxu0
    %v387 = vadd.f32 %v198, %v386
    %388 = vmatmul.f32.gmra.mxu0 %v363
    %v389 = vpop.f32.mrf.mxu0
    %v390 = vadd.f32 %v199, %v389
    %391 = vdwg.mxu0
    %v392 = vsel %vm293, %v387, -inf
    %393 = vmax.xlane.f32.xlu0 %v392
    %v394 = vpop.xlane.xlu0 %393
    %v395 = vsel %vm293, %v390, -inf
    %396 = vmax.xlane.f32.xlu0 %v395
    %v397 = vpop.xlane.xlu0 %396
    %v398 = vsub.f32 %v387, %v394
    %v399 = vsub.f32 %v390, %v397
    %v400 = vmul.f32 %v398, 1.442695
    %v401 = vpow.pop %v400
    %v402 = vmul.f32 %v399, 1.442695
    %v403 = vpow.pop %v402
    %v404 = vsel %vm293, %v401, 0.0
    %405 = vadd.xlane.f32.xlu0 %v404
    %v406 = vpop.xlane.xlu0 %405
    %v407 = vsel %vm293, %v403, 0.0
    %408 = vadd.xlane.f32.xlu0 %v407
    %v409 = vpop.xlane.xlu0 %408
    %v410 = vrcp.pop %v406
    %v411 = vrcp.pop %v409
    %v412 = vmul.f32 %v401, %v410
    %v413 = vmul.f32 %v403, %v411
    %414 = vrot.lane.b32.xlu0 %v251, 56
    %v415 = vpop.permute.xlu0 %414
    %416 = vrot.lane.b32.xlu0 %v252, 56
    %v417 = vpop.permute.xlu0 %416
    %v421 = vsel %vm293, %v412, 0
    %v424 = vsel %vm293, %v413, 0
    %426 = vmatpush.msra.mxu0 0.0
    %427 = vmatpush.msra.mxu0 0.0
    %428 = vmatpush.msra.mxu0 0.0
    %429 = vmatpush.msra.mxu0 0.0
    %430 = vmatpush.msra.mxu0 0.0
    %431 = vmatpush.msra.mxu0 0.0
    %432 = vmatpush.msra.mxu0 0.0
    %433 = vmatpush.msra.mxu0 0.0
    %434 = vmatpush.msra.mxu0 0.0
    %435 = vmatpush.msra.mxu0 0.0
    %436 = vmatpush.msra.mxu0 0.0
    %437 = vmatpush.msra.mxu0 0.0
    %438 = vmatpush.msra.mxu0 0.0
    %439 = vmatpush.msra.mxu0 0.0
    %440 = vmatpush.msra.mxu0 %v417
    %441 = vmatpush.msra.mxu0 %v415
    %442 = vmatmul.f32.gmra.mxu0 %v421
    %v443 = vpop.f32.mrf.mxu0
    %v444 = vadd.f32 0.0, %v443
    %445 = vmatmul.f32.gmra.mxu0 %v424
    %v446 = vpop.f32.mrf.mxu0
    %v447 = vadd.f32 0.0, %v446
    %448 = vdwg.mxu0
    %449 = vrot.lane.b32.xlu0 %v237, 112
    %v450 = vpop.permute.xlu0 %449
    %451 = vrot.lane.b32.xlu0 %v238, 112
    %v452 = vpop.permute.xlu0 %451
    %453 = vrot.lane.b32.xlu0 %v244, 80
    %v454 = vpop.permute.xlu0 %453
    %455 = vrot.lane.b32.xlu0 %v245, 80
    %v456 = vpop.permute.xlu0 %455
    %v457 = vsel %vm259, %v450, 0
    %v459 = vsel %vm259, %v452, 0
    %v461 = vsel %vm259, %v454, 0
    %v463 = vsel %vm259, %v456, 0
    %465 = vmatpush.xpose.msra.mxu0 0.0
    %466 = vmatpush.xpose.msra.mxu0 0.0
    %467 = vmatpush.xpose.msra.mxu0 0.0
    %468 = vmatpush.xpose.msra.mxu0 0.0
    %469 = vmatpush.xpose.msra.mxu0 0.0
    %470 = vmatpush.xpose.msra.mxu0 0.0
    %471 = vmatpush.xpose.msra.mxu0 0.0
    %472 = vmatpush.xpose.msra.mxu0 0.0
    %473 = vmatpush.xpose.msra.mxu0 0.0
    %474 = vmatpush.xpose.msra.mxu0 0.0
    %475 = vmatpush.xpose.msra.mxu0 0.0
    %476 = vmatpush.xpose.msra.mxu0 0.0
    %477 = vmatpush.xpose.msra.mxu0 0.0
    %478 = vmatpush.xpose.msra.mxu0 0.0
    %479 = vmatpush.xpose.msra.mxu0 %v463
    %480 = vmatpush.xpose.msra.mxu0 %v461
    %481 = vmatmul.f32.gmra.mxu0 %v457
    %v482 = vpop.f32.mrf.mxu0
    %v483 = vadd.f32 %v198, %v482
    %484 = vmatmul.f32.gmra.mxu0 %v459
    %v485 = vpop.f32.mrf.mxu0
    %v486 = vadd.f32 %v199, %v485
    %487 = vdwg.mxu0
    %v488 = vsel %vm293, %v483, -inf
    %489 = vmax.xlane.f32.xlu0 %v488
    %v490 = vpop.xlane.xlu0 %489
    %v491 = vsel %vm293, %v486, -inf
    %492 = vmax.xlane.f32.xlu0 %v491
    %v493 = vpop.xlane.xlu0 %492
    %v494 = vsub.f32 %v483, %v490
    %v495 = vsub.f32 %v486, %v493
    %v496 = vmul.f32 %v494, 1.442695
    %v497 = vpow.pop %v496
    %v498 = vmul.f32 %v495, 1.442695
    %v499 = vpow.pop %v498
    %v500 = vsel %vm293, %v497, 0.0
    %501 = vadd.xlane.f32.xlu0 %v500
    %v502 = vpop.xlane.xlu0 %501
    %v503 = vsel %vm293, %v499, 0.0
    %504 = vadd.xlane.f32.xlu0 %v503
    %v505 = vpop.xlane.xlu0 %504
    %v506 = vrcp.pop %v502
    %v507 = vrcp.pop %v505
    %v508 = vmul.f32 %v497, %v506
    %v509 = vmul.f32 %v499, %v507
    %510 = vrot.lane.b32.xlu0 %v251, 48
    %v511 = vpop.permute.xlu0 %510
    %512 = vrot.lane.b32.xlu0 %v252, 48
    %v513 = vpop.permute.xlu0 %512
    %v517 = vsel %vm293, %v508, 0
    %v520 = vsel %vm293, %v509, 0
    %522 = vmatpush.msra.mxu0 0.0
    %523 = vmatpush.msra.mxu0 0.0
    %524 = vmatpush.msra.mxu0 0.0
    %525 = vmatpush.msra.mxu0 0.0
    %526 = vmatpush.msra.mxu0 0.0
    %527 = vmatpush.msra.mxu0 0.0
    %528 = vmatpush.msra.mxu0 0.0
    %529 = vmatpush.msra.mxu0 0.0
    %530 = vmatpush.msra.mxu0 0.0
    %531 = vmatpush.msra.mxu0 0.0
    %532 = vmatpush.msra.mxu0 0.0
    %533 = vmatpush.msra.mxu0 0.0
    %534 = vmatpush.msra.mxu0 0.0
    %535 = vmatpush.msra.mxu0 0.0
    %536 = vmatpush.msra.mxu0 %v513
    %537 = vmatpush.msra.mxu0 %v511
    %538 = vmatmul.f32.gmra.mxu0 %v517
    %v539 = vpop.f32.mrf.mxu0
    %v540 = vadd.f32 0.0, %v539
    %541 = vmatmul.f32.gmra.mxu0 %v520
    %v542 = vpop.f32.mrf.mxu0
    %v543 = vadd.f32 0.0, %v542
    %544 = vdwg.mxu0
    %545 = vrot.lane.b32.xlu0 %v237, 104
    %v546 = vpop.permute.xlu0 %545
    %547 = vrot.lane.b32.xlu0 %v238, 104
    %v548 = vpop.permute.xlu0 %547
    %549 = vrot.lane.b32.xlu0 %v244, 72
    %v550 = vpop.permute.xlu0 %549
    %551 = vrot.lane.b32.xlu0 %v245, 72
    %v552 = vpop.permute.xlu0 %551
    %v553 = vsel %vm259, %v546, 0
    %v555 = vsel %vm259, %v548, 0
    %v557 = vsel %vm259, %v550, 0
    %v559 = vsel %vm259, %v552, 0
    %561 = vmatpush.xpose.msra.mxu0 0.0
    %562 = vmatpush.xpose.msra.mxu0 0.0
    %563 = vmatpush.xpose.msra.mxu0 0.0
    %564 = vmatpush.xpose.msra.mxu0 0.0
    %565 = vmatpush.xpose.msra.mxu0 0.0
    %566 = vmatpush.xpose.msra.mxu0 0.0
    %567 = vmatpush.xpose.msra.mxu0 0.0
    %568 = vmatpush.xpose.msra.mxu0 0.0
    %569 = vmatpush.xpose.msra.mxu0 0.0
    %570 = vmatpush.xpose.msra.mxu0 0.0
    %571 = vmatpush.xpose.msra.mxu0 0.0
    %572 = vmatpush.xpose.msra.mxu0 0.0
    %573 = vmatpush.xpose.msra.mxu0 0.0
    %574 = vmatpush.xpose.msra.mxu0 0.0
    %575 = vmatpush.xpose.msra.mxu0 %v559
    %576 = vmatpush.xpose.msra.mxu0 %v557
    %577 = vmatmul.f32.gmra.mxu0 %v553
    %v578 = vpop.f32.mrf.mxu0
    %v579 = vadd.f32 %v198, %v578
    %580 = vmatmul.f32.gmra.mxu0 %v555
    %v581 = vpop.f32.mrf.mxu0
    %v582 = vadd.f32 %v199, %v581
    %583 = vdwg.mxu0
    %v584 = vsel %vm293, %v579, -inf
    %585 = vmax.xlane.f32.xlu0 %v584
    %v586 = vpop.xlane.xlu0 %585
    %v587 = vsel %vm293, %v582, -inf
    %588 = vmax.xlane.f32.xlu0 %v587
    %v589 = vpop.xlane.xlu0 %588
    %v590 = vsub.f32 %v579, %v586
    %v591 = vsub.f32 %v582, %v589
    %v592 = vmul.f32 %v590, 1.442695
    %v593 = vpow.pop %v592
    %v594 = vmul.f32 %v591, 1.442695
    %v595 = vpow.pop %v594
    %v596 = vsel %vm293, %v593, 0.0
    %597 = vadd.xlane.f32.xlu0 %v596
    %v598 = vpop.xlane.xlu0 %597
    %v599 = vsel %vm293, %v595, 0.0
    %600 = vadd.xlane.f32.xlu0 %v599
    %v601 = vpop.xlane.xlu0 %600
    %v602 = vrcp.pop %v598
    %v603 = vrcp.pop %v601
    %v604 = vmul.f32 %v593, %v602
    %v605 = vmul.f32 %v595, %v603
    %606 = vrot.lane.b32.xlu0 %v251, 40
    %v607 = vpop.permute.xlu0 %606
    %608 = vrot.lane.b32.xlu0 %v252, 40
    %v609 = vpop.permute.xlu0 %608
    %v613 = vsel %vm293, %v604, 0
    %v616 = vsel %vm293, %v605, 0
    %618 = vmatpush.msra.mxu0 0.0
    %619 = vmatpush.msra.mxu0 0.0
    %620 = vmatpush.msra.mxu0 0.0
    %621 = vmatpush.msra.mxu0 0.0
    %622 = vmatpush.msra.mxu0 0.0
    %623 = vmatpush.msra.mxu0 0.0
    %624 = vmatpush.msra.mxu0 0.0
    %625 = vmatpush.msra.mxu0 0.0
    %626 = vmatpush.msra.mxu0 0.0
    %627 = vmatpush.msra.mxu0 0.0
    %628 = vmatpush.msra.mxu0 0.0
    %629 = vmatpush.msra.mxu0 0.0
    %630 = vmatpush.msra.mxu0 0.0
    %631 = vmatpush.msra.mxu0 0.0
    %632 = vmatpush.msra.mxu0 %v609
    %633 = vmatpush.msra.mxu0 %v607
    %634 = vmatmul.f32.gmra.mxu0 %v613
    %v635 = vpop.f32.mrf.mxu0
    %v636 = vadd.f32 0.0, %v635
    %637 = vmatmul.f32.gmra.mxu0 %v616
    %v638 = vpop.f32.mrf.mxu0
    %v639 = vadd.f32 0.0, %v638
    %640 = vdwg.mxu0
    %643 = vrot.lane.b32.xlu0 %v444, 8
    %v644 = vpop.permute.xlu0 %643
    %645 = vrot.lane.b32.xlu0 %v447, 8
    %v646 = vpop.permute.xlu0 %645
    %651 = vrot.lane.b32.xlu0 %v540, 16
    %v652 = vpop.permute.xlu0 %651
    %653 = vrot.lane.b32.xlu0 %v543, 16
    %v654 = vpop.permute.xlu0 %653
    %659 = vrot.lane.b32.xlu0 %v636, 24
    %v660 = vpop.permute.xlu0 %659
    %661 = vrot.lane.b32.xlu0 %v639, 24
    %v662 = vpop.permute.xlu0 %661
    %v665 = vsel %vm259, %v348, %v644
    %v666 = vsel %vm259, %v351, %v646
    %v667 = vsel %vm293, %v665, %v652
    %v668 = vsel %vm293, %v666, %v654
    %vm669 = vcmask 195584
    %v670 = vsel %vm669, %v667, %v660
    %v671 = vsel %vm669, %v668, %v662
    %v672 = vpack.c.bf16 %v671, %v670
    %v673 = vperm.slane %v204, 3
    %674 = vrot.lane.b32.xlu0 %v215, 32
    %v675 = vpop.permute.xlu0 %674
    %676 = vrot.lane.b32.xlu0 %v216, 32
    %v677 = vpop.permute.xlu0 %676
    %v681 = vsel %vm140, %v672, 0
    %683 = vmatpush.bf16.msra.mxu0 0
    %684 = vmatpush.bf16.msra.mxu0 0
    %685 = vmatpush.bf16.msra.mxu0 0
    %686 = vmatpush.bf16.msra.mxu0 0
    %687 = vmatpush.bf16.msra.mxu0 0
    %688 = vmatpush.bf16.msra.mxu0 0
    %689 = vmatpush.bf16.msra.mxu0 %v677
    %690 = vmatpush.bf16.msra.mxu0 %v675
    %691 = vmatmul.bf16.gmra.mxu0 %v681
    %v692 = vpop.f32.mrf.mxu0
    %v693 = vadd.f32 %v673, %v692
    %v694 = vpop.f32.mrf.mxu0
    %v695 = vadd.f32 %v673, %v694
    %696 = vdwg.mxu0
    %v697 = vadd.f32 %v693, %v196
    %v698 = vadd.f32 %v695, %v197
    %v699 = vsel %vm140, %v697, 0.0
    %700 = vadd.xlane.f32.xlu0 %v699
    %v701 = vpop.xlane.xlu0 %700
    %v702 = vsel %vm140, %v698, 0.0
    %703 = vadd.xlane.f32.xlu0 %v702
    %v704 = vpop.xlane.xlu0 %703
    %v705 = vmul.f32 %v701, %v153
    %v706 = vmul.f32 %v704, %v153
    %v707 = vsub.f32 %v697, %v705
    %v708 = vsub.f32 %v698, %v706
    %v709 = vmul.f32 %v707, %v707
    %v710 = vmul.f32 %v708, %v708
    %v711 = vsel %vm140, %v709, 0.0
    %712 = vadd.xlane.f32.xlu0 %v711
    %v713 = vpop.xlane.xlu0 %712
    %v714 = vsel %vm140, %v710, 0.0
    %715 = vadd.xlane.f32.xlu0 %v714
    %v716 = vpop.xlane.xlu0 %715
    %v717 = vmul.f32 %v713, %v153
    %v718 = vmul.f32 %v716, %v153
    %v719 = vadd.f32 %v717, 1e-12
    %v720 = vadd.f32 %v718, 1e-12
    %v721 = vrsqrt.pop %v719
    %v722 = vmul.f32 %v721, %v719
    %v723 = vmul.f32 %v722, %v721
    %v724 = vmul.f32 0.5, %v723
    %v725 = vsub.f32 1.5, %v724
    %v726 = vmul.f32 %v721, %v725
    %vm727 = vweird.f32 %v719
    %vm728 = vweird.f32 %v721
    %vm729 = vmor %vm727, %vm728
    %v730 = vsel %vm729, %v721, %v726
    %v731 = vrsqrt.pop %v720
    %v732 = vmul.f32 %v731, %v720
    %v733 = vmul.f32 %v732, %v731
    %v734 = vmul.f32 0.5, %v733
    %v735 = vsub.f32 1.5, %v734
    %v736 = vmul.f32 %v731, %v735
    %vm737 = vweird.f32 %v720
    %vm738 = vweird.f32 %v731
    %vm739 = vmor %vm737, %vm738
    %v740 = vsel %vm739, %v731, %v736
    %v741 = vmul.f32 %v707, %v730
    %v742 = vmul.f32 %v708, %v740
    %v743 = vperm.slane %v204, 4
    %v744 = vmul.f32 %v741, %v743
    %v745 = vmul.f32 %v742, %v743
    %v746 = vperm.slane %v204, 5
    %v747 = vadd.f32 %v744, %v746
    %v748 = vadd.f32 %v745, %v746
    %v749 = vpack.c.bf16 %v748, %v747
    %v750 = vld [vmem:[%s6] sm:$0xf]
    %v751 = vld [vmem:[%s6 + $0x4] sm:$0xf]
    %v752 = vld [vmem:[%s6 + $0x8] sm:$0xf]
    %v753 = vld [vmem:[%s6 + $0xc] sm:$0xf]
    %v754 = vld [vmem:[%s9] sm:$0x1]
    %v756 = vperm.slane %v754, 0
    %v762 = vunpack.c.l.b16 %v750
    %v763 = vunpack.c.l.b16 %v751
    %v764 = vunpack.c.l.b16 %v752
    %v765 = vunpack.c.l.b16 %v753
    %v766 = vpack.c.b16 %v763, %v762
    %v767 = vpack.c.b16 %v765, %v764
    %v771 = vsel %vm140, %v749, 0
    %773 = vmatpush.bf16.msra.mxu0 0
    %774 = vmatpush.bf16.msra.mxu0 0
    %775 = vmatpush.bf16.msra.mxu0 0
    %776 = vmatpush.bf16.msra.mxu0 0
    %777 = vmatpush.bf16.msra.mxu0 0
    %778 = vmatpush.bf16.msra.mxu0 0
    %779 = vmatpush.bf16.msra.mxu0 %v767
    %780 = vmatpush.bf16.msra.mxu0 %v766
    %781 = vmatmul.bf16.gmra.mxu0 %v771
    %v782 = vpop.f32.mrf.mxu0
    %v783 = vadd.f32 %v756, %v782
    %v784 = vpop.f32.mrf.mxu0
    %v785 = vadd.f32 %v756, %v784
    %786 = vdwg.mxu0
    %v787 = vmul.f32 %v783, %v783
    %v788 = vmul.f32 %v785, %v785
    %v789 = vmul.f32 %v783, %v787
    %v790 = vmul.f32 %v785, %v788
    %v791 = vmul.f32 %v789, 0.044715
    %v792 = vmul.f32 %v790, 0.044715
    %v793 = vadd.f32 %v783, %v791
    %v794 = vadd.f32 %v785, %v792
    %v795 = vmul.f32 %v793, 0.7978846
    %v796 = vmul.f32 %v794, 0.7978846
    %v797 = vtanh.pop %v795
    %v798 = vtanh.pop %v796
    %v799 = vadd.f32 %v797, 1.0
    %v800 = vadd.f32 %v798, 1.0
    %v801 = vmul.f32 %v799, 0.5
    %v802 = vmul.f32 %v800, 0.5
    %v803 = vmul.f32 %v783, %v801
    %v804 = vmul.f32 %v785, %v802
    %v805 = vpack.c.bf16 %v804, %v803
    %v806 = vld [vmem:[%s7] sm:$0xf]
    %v807 = vld [vmem:[%s7 + $0x4] sm:$0xf]
    %v808 = vld [vmem:[%s7 + $0x8] sm:$0xf]
    %v809 = vld [vmem:[%s7 + $0xc] sm:$0xf]
    %v810 = vld [vmem:[%s7 + $0x10] sm:$0xf]
    %v811 = vld [vmem:[%s7 + $0x14] sm:$0xf]
    %v812 = vld [vmem:[%s7 + $0x18] sm:$0xf]
    %v813 = vld [vmem:[%s7 + $0x1c] sm:$0xf]
    %v814 = vld [vmem:[%s7 + $0x20] sm:$0xf]
    %v815 = vld [vmem:[%s7 + $0x24] sm:$0xf]
    %v816 = vld [vmem:[%s7 + $0x28] sm:$0xf]
    %v817 = vld [vmem:[%s7 + $0x2c] sm:$0xf]
    %v818 = vld [vmem:[%s7 + $0x30] sm:$0xf]
    %v819 = vld [vmem:[%s7 + $0x34] sm:$0xf]
    %v820 = vld [vmem:[%s7 + $0x38] sm:$0xf]
    %v821 = vld [vmem:[%s7 + $0x3c] sm:$0xf]
    %v822 = vperm.slane %v204, 6
    %v839 = vunpack.c.l.b16 %v806
    %v840 = vunpack.c.l.b16 %v807
    %v841 = vunpack.c.l.b16 %v808
    %v842 = vunpack.c.l.b16 %v809
    %v843 = vunpack.c.l.b16 %v810
    %v844 = vunpack.c.l.b16 %v811
    %v845 = vunpack.c.l.b16 %v812
    %v846 = vunpack.c.l.b16 %v813
    %v847 = vunpack.c.l.b16 %v814
    %v848 = vunpack.c.l.b16 %v815
    %v849 = vunpack.c.l.b16 %v816
    %v850 = vunpack.c.l.b16 %v817
    %v851 = vunpack.c.l.b16 %v818
    %v852 = vunpack.c.l.b16 %v819
    %v853 = vunpack.c.l.b16 %v820
    %v854 = vunpack.c.l.b16 %v821
    %v855 = vpack.c.b16 %v840, %v839
    %v856 = vpack.c.b16 %v842, %v841
    %v857 = vpack.c.b16 %v844, %v843
    %v858 = vpack.c.b16 %v846, %v845
    %v859 = vpack.c.b16 %v848, %v847
    %v860 = vpack.c.b16 %v850, %v849
    %v861 = vpack.c.b16 %v852, %v851
    %v862 = vpack.c.b16 %v854, %v853
    %871 = vmatpush.bf16.msra.mxu0 %v862
    %872 = vmatpush.bf16.msra.mxu0 %v861
    %873 = vmatpush.bf16.msra.mxu0 %v860
    %874 = vmatpush.bf16.msra.mxu0 %v859
    %875 = vmatpush.bf16.msra.mxu0 %v858
    %876 = vmatpush.bf16.msra.mxu0 %v857
    %877 = vmatpush.bf16.msra.mxu0 %v856
    %878 = vmatpush.bf16.msra.mxu0 %v855
    %879 = vmatmul.bf16.gmra.mxu0 %v805
    %v880 = vpop.f32.mrf.mxu0
    %v881 = vadd.f32 %v822, %v880
    %v882 = vpop.f32.mrf.mxu0
    %v883 = vadd.f32 %v822, %v882
    %884 = vdwg.mxu0
    %v885 = vadd.f32 %v881, %v747
    %v886 = vadd.f32 %v883, %v748
    %v887 = vsel %vm140, %v885, 0.0
    %888 = vadd.xlane.f32.xlu0 %v887
    %v889 = vpop.xlane.xlu0 %888
    %v890 = vsel %vm140, %v886, 0.0
    %891 = vadd.xlane.f32.xlu0 %v890
    %v892 = vpop.xlane.xlu0 %891
    %v893 = vmul.f32 %v889, %v153
    %v894 = vmul.f32 %v892, %v153
    %v895 = vsub.f32 %v885, %v893
    %v896 = vsub.f32 %v886, %v894
    %v897 = vmul.f32 %v895, %v895
    %v898 = vmul.f32 %v896, %v896
    %v899 = vsel %vm140, %v897, 0.0
    %900 = vadd.xlane.f32.xlu0 %v899
    %v901 = vpop.xlane.xlu0 %900
    %v902 = vsel %vm140, %v898, 0.0
    %903 = vadd.xlane.f32.xlu0 %v902
    %v904 = vpop.xlane.xlu0 %903
    %v905 = vmul.f32 %v901, %v153
    %v906 = vmul.f32 %v904, %v153
    %v907 = vadd.f32 %v905, 1e-12
    %v908 = vadd.f32 %v906, 1e-12
    %v909 = vrsqrt.pop %v907
    %v910 = vmul.f32 %v909, %v907
    %v911 = vmul.f32 %v910, %v909
    %v912 = vmul.f32 0.5, %v911
    %v913 = vsub.f32 1.5, %v912
    %v914 = vmul.f32 %v909, %v913
    %vm915 = vweird.f32 %v907
    %vm916 = vweird.f32 %v909
    %vm917 = vmor %vm915, %vm916
    %v918 = vsel %vm917, %v909, %v914
    %v919 = vrsqrt.pop %v908
    %v920 = vmul.f32 %v919, %v908
    %v921 = vmul.f32 %v920, %v919
    %v922 = vmul.f32 0.5, %v921
    %v923 = vsub.f32 1.5, %v922
    %v924 = vmul.f32 %v919, %v923
    %vm925 = vweird.f32 %v908
    %vm926 = vweird.f32 %v919
    %vm927 = vmor %vm925, %vm926
    %v928 = vsel %vm927, %v919, %v924
    %v929 = vmul.f32 %v895, %v918
    %v930 = vmul.f32 %v896, %v928
    %v931 = vperm.slane %v204, 7
    %v932 = vmul.f32 %v929, %v931
    %v933 = vmul.f32 %v930, %v931
    %v934 = vperm.slane %v205, 0
    %v935 = vadd.f32 %v932, %v934
    %v936 = vadd.f32 %v933, %v934
    %s937 = scalar_lea.vmem %s5, 16
    %v938 = vld [vmem:[%s937] sm:$0xf]
    %v939 = vld [vmem:[%s937 + $0x4] sm:$0xf]
    %v940 = vld [vmem:[%s937 + $0x8] sm:$0xf]
    %v941 = vld [vmem:[%s937 + $0xc] sm:$0xf]
    %s942 = scalar_lea.vmem %s8, 16
    %v943 = vld [vmem:[%s942] sm:$0xff]
    %v944 = vld [vmem:[%s942 + $0x8] sm:$0x1]
    %v945 = vpack.c.bf16 %v936, %v935
    %v950 = vunpack.c.l.b16 %v938
    %v951 = vunpack.c.l.b16 %v939
    %v952 = vunpack.c.l.b16 %v940
    %v953 = vunpack.c.l.b16 %v941
    %v954 = vpack.c.b16 %v951, %v950
    %v955 = vpack.c.b16 %v953, %v952
    %v959 = vsel %vm140, %v945, 0
    %961 = vmatpush.bf16.msra.mxu0 0
    %962 = vmatpush.bf16.msra.mxu0 0
    %963 = vmatpush.bf16.msra.mxu0 0
    %964 = vmatpush.bf16.msra.mxu0 0
    %965 = vmatpush.bf16.msra.mxu0 0
    %966 = vmatpush.bf16.msra.mxu0 0
    %967 = vmatpush.bf16.msra.mxu0 %v955
    %968 = vmatpush.bf16.msra.mxu0 %v954
    %969 = vmatmul.bf16.gmra.mxu0 %v959
    %v970 = vpop.f32.mrf.mxu0
    %v971 = vadd.f32 0.0, %v970
    %v972 = vpop.f32.mrf.mxu0
    %v973 = vadd.f32 0.0, %v972
    %974 = vdwg.mxu0
    %v975 = vperm.slane %v943, 0
    %v976 = vadd.f32 %v971, %v975
    %v977 = vadd.f32 %v973, %v975
    %v978 = vperm.slane %v943, 1
    %980 = vrot.lane.b32.xlu0 %v978, 32
    %v981 = vpop.permute.xlu0 %980
    %v983 = vadd.f32 %v971, %v981
    %v984 = vadd.f32 %v973, %v981
    %v985 = vperm.slane %v943, 2
    %987 = vrot.lane.b32.xlu0 %v985, 64
    %v988 = vpop.permute.xlu0 %987
    %v990 = vadd.f32 %v971, %v988
    %v991 = vadd.f32 %v973, %v988
    %994 = vrot.lane.b32.xlu0 %v983, 96
    %v995 = vpop.permute.xlu0 %994
    %996 = vrot.lane.b32.xlu0 %v984, 96
    %v997 = vpop.permute.xlu0 %996
    %v999 = vsel %vm259, %v976, 0
    %v1002 = vsel %vm259, %v977, 0
    %v1004 = vsel %vm259, %v995, 0
    %v1006 = vsel %vm259, %v997, 0
    %1008 = vmatpush.xpose.msra.mxu0 0.0
    %1009 = vmatpush.xpose.msra.mxu0 0.0
    %1010 = vmatpush.xpose.msra.mxu0 0.0
    %1011 = vmatpush.xpose.msra.mxu0 0.0
    %1012 = vmatpush.xpose.msra.mxu0 0.0
    %1013 = vmatpush.xpose.msra.mxu0 0.0
    %1014 = vmatpush.xpose.msra.mxu0 0.0
    %1015 = vmatpush.xpose.msra.mxu0 0.0
    %1016 = vmatpush.xpose.msra.mxu0 0.0
    %1017 = vmatpush.xpose.msra.mxu0 0.0
    %1018 = vmatpush.xpose.msra.mxu0 0.0
    %1019 = vmatpush.xpose.msra.mxu0 0.0
    %1020 = vmatpush.xpose.msra.mxu0 0.0
    %1021 = vmatpush.xpose.msra.mxu0 0.0
    %1022 = vmatpush.xpose.msra.mxu0 %v1006
    %1023 = vmatpush.xpose.msra.mxu0 %v1004
    %1024 = vmatmul.f32.gmra.mxu0 %v999
    %v1025 = vpop.f32.mrf.mxu0
    %v1026 = vadd.f32 %v198, %v1025
    %1027 = vmatmul.f32.gmra.mxu0 %v1002
    %v1028 = vpop.f32.mrf.mxu0
    %v1029 = vadd.f32 %v199, %v1028
    %1030 = vdwg.mxu0
    %v1031 = vsel %vm293, %v1026, -inf
    %1032 = vmax.xlane.f32.xlu0 %v1031
    %v1033 = vpop.xlane.xlu0 %1032
    %v1034 = vsel %vm293, %v1029, -inf
    %1035 = vmax.xlane.f32.xlu0 %v1034
    %v1036 = vpop.xlane.xlu0 %1035
    %v1037 = vsub.f32 %v1026, %v1033
    %v1038 = vsub.f32 %v1029, %v1036
    %v1039 = vmul.f32 %v1037, 1.442695
    %v1040 = vpow.pop %v1039
    %v1041 = vmul.f32 %v1038, 1.442695
    %v1042 = vpow.pop %v1041
    %v1043 = vsel %vm293, %v1040, 0.0
    %1044 = vadd.xlane.f32.xlu0 %v1043
    %v1045 = vpop.xlane.xlu0 %1044
    %v1046 = vsel %vm293, %v1042, 0.0
    %1047 = vadd.xlane.f32.xlu0 %v1046
    %v1048 = vpop.xlane.xlu0 %1047
    %v1049 = vrcp.pop %v1045
    %v1050 = vrcp.pop %v1048
    %v1051 = vmul.f32 %v1040, %v1049
    %v1052 = vmul.f32 %v1042, %v1050
    %1055 = vrot.lane.b32.xlu0 %v990, 64
    %v1056 = vpop.permute.xlu0 %1055
    %1057 = vrot.lane.b32.xlu0 %v991, 64
    %v1058 = vpop.permute.xlu0 %1057
    %v1062 = vsel %vm293, %v1051, 0
    %v1065 = vsel %vm293, %v1052, 0
    %1067 = vmatpush.msra.mxu0 0.0
    %1068 = vmatpush.msra.mxu0 0.0
    %1069 = vmatpush.msra.mxu0 0.0
    %1070 = vmatpush.msra.mxu0 0.0
    %1071 = vmatpush.msra.mxu0 0.0
    %1072 = vmatpush.msra.mxu0 0.0
    %1073 = vmatpush.msra.mxu0 0.0
    %1074 = vmatpush.msra.mxu0 0.0
    %1075 = vmatpush.msra.mxu0 0.0
    %1076 = vmatpush.msra.mxu0 0.0
    %1077 = vmatpush.msra.mxu0 0.0
    %1078 = vmatpush.msra.mxu0 0.0
    %1079 = vmatpush.msra.mxu0 0.0
    %1080 = vmatpush.msra.mxu0 0.0
    %1081 = vmatpush.msra.mxu0 %v1058
    %1082 = vmatpush.msra.mxu0 %v1056
    %1083 = vmatmul.f32.gmra.mxu0 %v1062
    %v1084 = vpop.f32.mrf.mxu0
    %v1085 = vadd.f32 0.0, %v1084
    %1086 = vmatmul.f32.gmra.mxu0 %v1065
    %v1087 = vpop.f32.mrf.mxu0
    %v1088 = vadd.f32 0.0, %v1087
    %1089 = vdwg.mxu0
    %1090 = vrot.lane.b32.xlu0 %v976, 120
    %v1091 = vpop.permute.xlu0 %1090
    %1092 = vrot.lane.b32.xlu0 %v977, 120
    %v1093 = vpop.permute.xlu0 %1092
    %1094 = vrot.lane.b32.xlu0 %v983, 88
    %v1095 = vpop.permute.xlu0 %1094
    %1096 = vrot.lane.b32.xlu0 %v984, 88
    %v1097 = vpop.permute.xlu0 %1096
    %v1098 = vsel %vm259, %v1091, 0
    %v1100 = vsel %vm259, %v1093, 0
    %v1102 = vsel %vm259, %v1095, 0
    %v1104 = vsel %vm259, %v1097, 0
    %1106 = vmatpush.xpose.msra.mxu0 0.0
    %1107 = vmatpush.xpose.msra.mxu0 0.0
    %1108 = vmatpush.xpose.msra.mxu0 0.0
    %1109 = vmatpush.xpose.msra.mxu0 0.0
    %1110 = vmatpush.xpose.msra.mxu0 0.0
    %1111 = vmatpush.xpose.msra.mxu0 0.0
    %1112 = vmatpush.xpose.msra.mxu0 0.0
    %1113 = vmatpush.xpose.msra.mxu0 0.0
    %1114 = vmatpush.xpose.msra.mxu0 0.0
    %1115 = vmatpush.xpose.msra.mxu0 0.0
    %1116 = vmatpush.xpose.msra.mxu0 0.0
    %1117 = vmatpush.xpose.msra.mxu0 0.0
    %1118 = vmatpush.xpose.msra.mxu0 0.0
    %1119 = vmatpush.xpose.msra.mxu0 0.0
    %1120 = vmatpush.xpose.msra.mxu0 %v1104
    %1121 = vmatpush.xpose.msra.mxu0 %v1102
    %1122 = vmatmul.f32.gmra.mxu0 %v1098
    %v1123 = vpop.f32.mrf.mxu0
    %v1124 = vadd.f32 %v198, %v1123
    %1125 = vmatmul.f32.gmra.mxu0 %v1100
    %v1126 = vpop.f32.mrf.mxu0
    %v1127 = vadd.f32 %v199, %v1126
    %1128 = vdwg.mxu0
    %v1129 = vsel %vm293, %v1124, -inf
    %1130 = vmax.xlane.f32.xlu0 %v1129
    %v1131 = vpop.xlane.xlu0 %1130
    %v1132 = vsel %vm293, %v1127, -inf
    %1133 = vmax.xlane.f32.xlu0 %v1132
    %v1134 = vpop.xlane.xlu0 %1133
    %v1135 = vsub.f32 %v1124, %v1131
    %v1136 = vsub.f32 %v1127, %v1134
    %v1137 = vmul.f32 %v1135, 1.442695
    %v1138 = vpow.pop %v1137
    %v1139 = vmul.f32 %v1136, 1.442695
    %v1140 = vpow.pop %v1139
    %v1141 = vsel %vm293, %v1138, 0.0
    %1142 = vadd.xlane.f32.xlu0 %v1141
    %v1143 = vpop.xlane.xlu0 %1142
    %v1144 = vsel %vm293, %v1140, 0.0
    %1145 = vadd.xlane.f32.xlu0 %v1144
    %v1146 = vpop.xlane.xlu0 %1145
    %v1147 = vrcp.pop %v1143
    %v1148 = vrcp.pop %v1146
    %v1149 = vmul.f32 %v1138, %v1147
    %v1150 = vmul.f32 %v1140, %v1148
    %1151 = vrot.lane.b32.xlu0 %v990, 56
    %v1152 = vpop.permute.xlu0 %1151
    %1153 = vrot.lane.b32.xlu0 %v991, 56
    %v1154 = vpop.permute.xlu0 %1153
    %v1158 = vsel %vm293, %v1149, 0
    %v1161 = vsel %vm293, %v1150, 0
    %1163 = vmatpush.msra.mxu0 0.0
    %1164 = vmatpush.msra.mxu0 0.0
    %1165 = vmatpush.msra.mxu0 0.0
    %1166 = vmatpush.msra.mxu0 0.0
    %1167 = vmatpush.msra.mxu0 0.0
    %1168 = vmatpush.msra.mxu0 0.0
    %1169 = vmatpush.msra.mxu0 0.0
    %1170 = vmatpush.msra.mxu0 0.0
    %1171 = vmatpush.msra.mxu0 0.0
    %1172 = vmatpush.msra.mxu0 0.0
    %1173 = vmatpush.msra.mxu0 0.0
    %1174 = vmatpush.msra.mxu0 0.0
    %1175 = vmatpush.msra.mxu0 0.0
    %1176 = vmatpush.msra.mxu0 0.0
    %1177 = vmatpush.msra.mxu0 %v1154
    %1178 = vmatpush.msra.mxu0 %v1152
    %1179 = vmatmul.f32.gmra.mxu0 %v1158
    %v1180 = vpop.f32.mrf.mxu0
    %v1181 = vadd.f32 0.0, %v1180
    %1182 = vmatmul.f32.gmra.mxu0 %v1161
    %v1183 = vpop.f32.mrf.mxu0
    %v1184 = vadd.f32 0.0, %v1183
    %1185 = vdwg.mxu0
    %1186 = vrot.lane.b32.xlu0 %v976, 112
    %v1187 = vpop.permute.xlu0 %1186
    %1188 = vrot.lane.b32.xlu0 %v977, 112
    %v1189 = vpop.permute.xlu0 %1188
    %1190 = vrot.lane.b32.xlu0 %v983, 80
    %v1191 = vpop.permute.xlu0 %1190
    %1192 = vrot.lane.b32.xlu0 %v984, 80
    %v1193 = vpop.permute.xlu0 %1192
    %v1194 = vsel %vm259, %v1187, 0
    %v1196 = vsel %vm259, %v1189, 0
    %v1198 = vsel %vm259, %v1191, 0
    %v1200 = vsel %vm259, %v1193, 0
    %1202 = vmatpush.xpose.msra.mxu0 0.0
    %1203 = vmatpush.xpose.msra.mxu0 0.0
    %1204 = vmatpush.xpose.msra.mxu0 0.0
    %1205 = vmatpush.xpose.msra.mxu0 0.0
    %1206 = vmatpush.xpose.msra.mxu0 0.0
    %1207 = vmatpush.xpose.msra.mxu0 0.0
    %1208 = vmatpush.xpose.msra.mxu0 0.0
    %1209 = vmatpush.xpose.msra.mxu0 0.0
    %1210 = vmatpush.xpose.msra.mxu0 0.0
    %1211 = vmatpush.xpose.msra.mxu0 0.0
    %1212 = vmatpush.xpose.msra.mxu0 0.0
    %1213 = vmatpush.xpose.msra.mxu0 0.0
    %1214 = vmatpush.xpose.msra.mxu0 0.0
    %1215 = vmatpush.xpose.msra.mxu0 0.0
    %1216 = vmatpush.xpose.msra.mxu0 %v1200
    %1217 = vmatpush.xpose.msra.mxu0 %v1198
    %1218 = vmatmul.f32.gmra.mxu0 %v1194
    %v1219 = vpop.f32.mrf.mxu0
    %v1220 = vadd.f32 %v198, %v1219
    %1221 = vmatmul.f32.gmra.mxu0 %v1196
    %v1222 = vpop.f32.mrf.mxu0
    %v1223 = vadd.f32 %v199, %v1222
    %1224 = vdwg.mxu0
    %v1225 = vsel %vm293, %v1220, -inf
    %1226 = vmax.xlane.f32.xlu0 %v1225
    %v1227 = vpop.xlane.xlu0 %1226
    %v1228 = vsel %vm293, %v1223, -inf
    %1229 = vmax.xlane.f32.xlu0 %v1228
    %v1230 = vpop.xlane.xlu0 %1229
    %v1231 = vsub.f32 %v1220, %v1227
    %v1232 = vsub.f32 %v1223, %v1230
    %v1233 = vmul.f32 %v1231, 1.442695
    %v1234 = vpow.pop %v1233
    %v1235 = vmul.f32 %v1232, 1.442695
    %v1236 = vpow.pop %v1235
    %v1237 = vsel %vm293, %v1234, 0.0
    %1238 = vadd.xlane.f32.xlu0 %v1237
    %v1239 = vpop.xlane.xlu0 %1238
    %v1240 = vsel %vm293, %v1236, 0.0
    %1241 = vadd.xlane.f32.xlu0 %v1240
    %v1242 = vpop.xlane.xlu0 %1241
    %v1243 = vrcp.pop %v1239
    %v1244 = vrcp.pop %v1242
    %v1245 = vmul.f32 %v1234, %v1243
    %v1246 = vmul.f32 %v1236, %v1244
    %1247 = vrot.lane.b32.xlu0 %v990, 48
    %v1248 = vpop.permute.xlu0 %1247
    %1249 = vrot.lane.b32.xlu0 %v991, 48
    %v1250 = vpop.permute.xlu0 %1249
    %v1254 = vsel %vm293, %v1245, 0
    %v1257 = vsel %vm293, %v1246, 0
    %1259 = vmatpush.msra.mxu0 0.0
    %1260 = vmatpush.msra.mxu0 0.0
    %1261 = vmatpush.msra.mxu0 0.0
    %1262 = vmatpush.msra.mxu0 0.0
    %1263 = vmatpush.msra.mxu0 0.0
    %1264 = vmatpush.msra.mxu0 0.0
    %1265 = vmatpush.msra.mxu0 0.0
    %1266 = vmatpush.msra.mxu0 0.0
    %1267 = vmatpush.msra.mxu0 0.0
    %1268 = vmatpush.msra.mxu0 0.0
    %1269 = vmatpush.msra.mxu0 0.0
    %1270 = vmatpush.msra.mxu0 0.0
    %1271 = vmatpush.msra.mxu0 0.0
    %1272 = vmatpush.msra.mxu0 0.0
    %1273 = vmatpush.msra.mxu0 %v1250
    %1274 = vmatpush.msra.mxu0 %v1248
    %1275 = vmatmul.f32.gmra.mxu0 %v1254
    %v1276 = vpop.f32.mrf.mxu0
    %v1277 = vadd.f32 0.0, %v1276
    %1278 = vmatmul.f32.gmra.mxu0 %v1257
    %v1279 = vpop.f32.mrf.mxu0
    %v1280 = vadd.f32 0.0, %v1279
    %1281 = vdwg.mxu0
    %1282 = vrot.lane.b32.xlu0 %v976, 104
    %v1283 = vpop.permute.xlu0 %1282
    %1284 = vrot.lane.b32.xlu0 %v977, 104
    %v1285 = vpop.permute.xlu0 %1284
    %1286 = vrot.lane.b32.xlu0 %v983, 72
    %v1287 = vpop.permute.xlu0 %1286
    %1288 = vrot.lane.b32.xlu0 %v984, 72
    %v1289 = vpop.permute.xlu0 %1288
    %v1290 = vsel %vm259, %v1283, 0
    %v1292 = vsel %vm259, %v1285, 0
    %v1294 = vsel %vm259, %v1287, 0
    %v1296 = vsel %vm259, %v1289, 0
    %1298 = vmatpush.xpose.msra.mxu0 0.0
    %1299 = vmatpush.xpose.msra.mxu0 0.0
    %1300 = vmatpush.xpose.msra.mxu0 0.0
    %1301 = vmatpush.xpose.msra.mxu0 0.0
    %1302 = vmatpush.xpose.msra.mxu0 0.0
    %1303 = vmatpush.xpose.msra.mxu0 0.0
    %1304 = vmatpush.xpose.msra.mxu0 0.0
    %1305 = vmatpush.xpose.msra.mxu0 0.0
    %1306 = vmatpush.xpose.msra.mxu0 0.0
    %1307 = vmatpush.xpose.msra.mxu0 0.0
    %1308 = vmatpush.xpose.msra.mxu0 0.0
    %1309 = vmatpush.xpose.msra.mxu0 0.0
    %1310 = vmatpush.xpose.msra.mxu0 0.0
    %1311 = vmatpush.xpose.msra.mxu0 0.0
    %1312 = vmatpush.xpose.msra.mxu0 %v1296
    %1313 = vmatpush.xpose.msra.mxu0 %v1294
    %1314 = vmatmul.f32.gmra.mxu0 %v1290
    %v1315 = vpop.f32.mrf.mxu0
    %v1316 = vadd.f32 %v198, %v1315
    %1317 = vmatmul.f32.gmra.mxu0 %v1292
    %v1318 = vpop.f32.mrf.mxu0
    %v1319 = vadd.f32 %v199, %v1318
    %1320 = vdwg.mxu0
    %v1321 = vsel %vm293, %v1316, -inf
    %1322 = vmax.xlane.f32.xlu0 %v1321
    %v1323 = vpop.xlane.xlu0 %1322
    %v1324 = vsel %vm293, %v1319, -inf
    %1325 = vmax.xlane.f32.xlu0 %v1324
    %v1326 = vpop.xlane.xlu0 %1325
    %v1327 = vsub.f32 %v1316, %v1323
    %v1328 = vsub.f32 %v1319, %v1326
    %v1329 = vmul.f32 %v1327, 1.442695
    %v1330 = vpow.pop %v1329
    %v1331 = vmul.f32 %v1328, 1.442695
    %v1332 = vpow.pop %v1331
    %v1333 = vsel %vm293, %v1330, 0.0
    %1334 = vadd.xlane.f32.xlu0 %v1333
    %v1335 = vpop.xlane.xlu0 %1334
    %v1336 = vsel %vm293, %v1332, 0.0
    %1337 = vadd.xlane.f32.xlu0 %v1336
    %v1338 = vpop.xlane.xlu0 %1337
    %v1339 = vrcp.pop %v1335
    %v1340 = vrcp.pop %v1338
    %v1341 = vmul.f32 %v1330, %v1339
    %v1342 = vmul.f32 %v1332, %v1340
    %1343 = vrot.lane.b32.xlu0 %v990, 40
    %v1344 = vpop.permute.xlu0 %1343
    %1345 = vrot.lane.b32.xlu0 %v991, 40
    %v1346 = vpop.permute.xlu0 %1345
    %v1350 = vsel %vm293, %v1341, 0
    %v1353 = vsel %vm293, %v1342, 0
    %1355 = vmatpush.msra.mxu0 0.0
    %1356 = vmatpush.msra.mxu0 0.0
    %1357 = vmatpush.msra.mxu0 0.0
    %1358 = vmatpush.msra.mxu0 0.0
    %1359 = vmatpush.msra.mxu0 0.0
    %1360 = vmatpush.msra.mxu0 0.0
    %1361 = vmatpush.msra.mxu0 0.0
    %1362 = vmatpush.msra.mxu0 0.0
    %1363 = vmatpush.msra.mxu0 0.0
    %1364 = vmatpush.msra.mxu0 0.0
    %1365 = vmatpush.msra.mxu0 0.0
    %1366 = vmatpush.msra.mxu0 0.0
    %1367 = vmatpush.msra.mxu0 0.0
    %1368 = vmatpush.msra.mxu0 0.0
    %1369 = vmatpush.msra.mxu0 %v1346
    %1370 = vmatpush.msra.mxu0 %v1344
    %1371 = vmatmul.f32.gmra.mxu0 %v1350
    %v1372 = vpop.f32.mrf.mxu0
    %v1373 = vadd.f32 0.0, %v1372
    %1374 = vmatmul.f32.gmra.mxu0 %v1353
    %v1375 = vpop.f32.mrf.mxu0
    %v1376 = vadd.f32 0.0, %v1375
    %1377 = vdwg.mxu0
    %1380 = vrot.lane.b32.xlu0 %v1181, 8
    %v1381 = vpop.permute.xlu0 %1380
    %1382 = vrot.lane.b32.xlu0 %v1184, 8
    %v1383 = vpop.permute.xlu0 %1382
    %1388 = vrot.lane.b32.xlu0 %v1277, 16
    %v1389 = vpop.permute.xlu0 %1388
    %1390 = vrot.lane.b32.xlu0 %v1280, 16
    %v1391 = vpop.permute.xlu0 %1390
    %1396 = vrot.lane.b32.xlu0 %v1373, 24
    %v1397 = vpop.permute.xlu0 %1396
    %1398 = vrot.lane.b32.xlu0 %v1376, 24
    %v1399 = vpop.permute.xlu0 %1398
    %v1402 = vsel %vm259, %v1085, %v1381
    %v1403 = vsel %vm259, %v1088, %v1383
    %v1404 = vsel %vm293, %v1402, %v1389
    %v1405 = vsel %vm293, %v1403, %v1391
    %v1406 = vsel %vm669, %v1404, %v1397
    %v1407 = vsel %vm669, %v1405, %v1399
    %v1408 = vpack.c.bf16 %v1407, %v1406
    %v1409 = vperm.slane %v943, 3
    %1410 = vrot.lane.b32.xlu0 %v954, 32
    %v1411 = vpop.permute.xlu0 %1410
    %1412 = vrot.lane.b32.xlu0 %v955, 32
    %v1413 = vpop.permute.xlu0 %1412
    %v1417 = vsel %vm140, %v1408, 0
    %1419 = vmatpush.bf16.msra.mxu0 0
    %1420 = vmatpush.bf16.msra.mxu0 0
    %1421 = vmatpush.bf16.msra.mxu0 0
    %1422 = vmatpush.bf16.msra.mxu0 0
    %1423 = vmatpush.bf16.msra.mxu0 0
    %1424 = vmatpush.bf16.msra.mxu0 0
    %1425 = vmatpush.bf16.msra.mxu0 %v1413
    %1426 = vmatpush.bf16.msra.mxu0 %v1411
    %1427 = vmatmul.bf16.gmra.mxu0 %v1417
    %v1428 = vpop.f32.mrf.mxu0
    %v1429 = vadd.f32 %v1409, %v1428
    %v1430 = vpop.f32.mrf.mxu0
    %v1431 = vadd.f32 %v1409, %v1430
    %1432 = vdwg.mxu0
    %v1433 = vadd.f32 %v1429, %v935
    %v1434 = vadd.f32 %v1431, %v936
    %v1435 = vsel %vm140, %v1433, 0.0
    %1436 = vadd.xlane.f32.xlu0 %v1435
    %v1437 = vpop.xlane.xlu0 %1436
    %v1438 = vsel %vm140, %v1434, 0.0
    %1439 = vadd.xlane.f32.xlu0 %v1438
    %v1440 = vpop.xlane.xlu0 %1439
    %v1441 = vmul.f32 %v1437, %v153
    %v1442 = vmul.f32 %v1440, %v153
    %v1443 = vsub.f32 %v1433, %v1441
    %v1444 = vsub.f32 %v1434, %v1442
    %v1445 = vmul.f32 %v1443, %v1443
    %v1446 = vmul.f32 %v1444, %v1444
    %v1447 = vsel %vm140, %v1445, 0.0
    %1448 = vadd.xlane.f32.xlu0 %v1447
    %v1449 = vpop.xlane.xlu0 %1448
    %v1450 = vsel %vm140, %v1446, 0.0
    %1451 = vadd.xlane.f32.xlu0 %v1450
    %v1452 = vpop.xlane.xlu0 %1451
    %v1453 = vmul.f32 %v1449, %v153
    %v1454 = vmul.f32 %v1452, %v153
    %v1455 = vadd.f32 %v1453, 1e-12
    %v1456 = vadd.f32 %v1454, 1e-12
    %v1457 = vrsqrt.pop %v1455
    %v1458 = vmul.f32 %v1457, %v1455
    %v1459 = vmul.f32 %v1458, %v1457
    %v1460 = vmul.f32 0.5, %v1459
    %v1461 = vsub.f32 1.5, %v1460
    %v1462 = vmul.f32 %v1457, %v1461
    %vm1463 = vweird.f32 %v1455
    %vm1464 = vweird.f32 %v1457
    %vm1465 = vmor %vm1463, %vm1464
    %v1466 = vsel %vm1465, %v1457, %v1462
    %v1467 = vrsqrt.pop %v1456
    %v1468 = vmul.f32 %v1467, %v1456
    %v1469 = vmul.f32 %v1468, %v1467
    %v1470 = vmul.f32 0.5, %v1469
    %v1471 = vsub.f32 1.5, %v1470
    %v1472 = vmul.f32 %v1467, %v1471
    %vm1473 = vweird.f32 %v1456
    %vm1474 = vweird.f32 %v1467
    %vm1475 = vmor %vm1473, %vm1474
    %v1476 = vsel %vm1475, %v1467, %v1472
    %v1477 = vmul.f32 %v1443, %v1466
    %v1478 = vmul.f32 %v1444, %v1476
    %v1479 = vperm.slane %v943, 4
    %v1480 = vmul.f32 %v1477, %v1479
    %v1481 = vmul.f32 %v1478, %v1479
    %v1482 = vperm.slane %v943, 5
    %v1483 = vadd.f32 %v1480, %v1482
    %v1484 = vadd.f32 %v1481, %v1482
    %v1485 = vpack.c.bf16 %v1484, %v1483
    %s1486 = scalar_lea.vmem %s6, 16
    %v1487 = vld [vmem:[%s1486] sm:$0xf]
    %v1488 = vld [vmem:[%s1486 + $0x4] sm:$0xf]
    %v1489 = vld [vmem:[%s1486 + $0x8] sm:$0xf]
    %v1490 = vld [vmem:[%s1486 + $0xc] sm:$0xf]
    %s1491 = scalar_lea.vmem %s9, 1
    %v1492 = vld [vmem:[%s1491] sm:$0x1]
    %v1494 = vperm.slane %v1492, 0
    %v1500 = vunpack.c.l.b16 %v1487
    %v1501 = vunpack.c.l.b16 %v1488
    %v1502 = vunpack.c.l.b16 %v1489
    %v1503 = vunpack.c.l.b16 %v1490
    %v1504 = vpack.c.b16 %v1501, %v1500
    %v1505 = vpack.c.b16 %v1503, %v1502
    %v1509 = vsel %vm140, %v1485, 0
    %1511 = vmatpush.bf16.msra.mxu0 0
    %1512 = vmatpush.bf16.msra.mxu0 0
    %1513 = vmatpush.bf16.msra.mxu0 0
    %1514 = vmatpush.bf16.msra.mxu0 0
    %1515 = vmatpush.bf16.msra.mxu0 0
    %1516 = vmatpush.bf16.msra.mxu0 0
    %1517 = vmatpush.bf16.msra.mxu0 %v1505
    %1518 = vmatpush.bf16.msra.mxu0 %v1504
    %1519 = vmatmul.bf16.gmra.mxu0 %v1509
    %v1520 = vpop.f32.mrf.mxu0
    %v1521 = vadd.f32 %v1494, %v1520
    %v1522 = vpop.f32.mrf.mxu0
    %v1523 = vadd.f32 %v1494, %v1522
    %1524 = vdwg.mxu0
    %v1525 = vmul.f32 %v1521, %v1521
    %v1526 = vmul.f32 %v1523, %v1523
    %v1527 = vmul.f32 %v1521, %v1525
    %v1528 = vmul.f32 %v1523, %v1526
    %v1529 = vmul.f32 %v1527, 0.044715
    %v1530 = vmul.f32 %v1528, 0.044715
    %v1531 = vadd.f32 %v1521, %v1529
    %v1532 = vadd.f32 %v1523, %v1530
    %v1533 = vmul.f32 %v1531, 0.7978846
    %v1534 = vmul.f32 %v1532, 0.7978846
    %v1535 = vtanh.pop %v1533
    %v1536 = vtanh.pop %v1534
    %v1537 = vadd.f32 %v1535, 1.0
    %v1538 = vadd.f32 %v1536, 1.0
    %v1539 = vmul.f32 %v1537, 0.5
    %v1540 = vmul.f32 %v1538, 0.5
    %v1541 = vmul.f32 %v1521, %v1539
    %v1542 = vmul.f32 %v1523, %v1540
    %v1543 = vpack.c.bf16 %v1542, %v1541
    %s1544 = scalar_lea.vmem %s7, 64
    %v1545 = vld [vmem:[%s1544] sm:$0xf]
    %v1546 = vld [vmem:[%s1544 + $0x4] sm:$0xf]
    %v1547 = vld [vmem:[%s1544 + $0x8] sm:$0xf]
    %v1548 = vld [vmem:[%s1544 + $0xc] sm:$0xf]
    %v1549 = vld [vmem:[%s1544 + $0x10] sm:$0xf]
    %v1550 = vld [vmem:[%s1544 + $0x14] sm:$0xf]
    %v1551 = vld [vmem:[%s1544 + $0x18] sm:$0xf]
    %v1552 = vld [vmem:[%s1544 + $0x1c] sm:$0xf]
    %v1553 = vld [vmem:[%s1544 + $0x20] sm:$0xf]
    %v1554 = vld [vmem:[%s1544 + $0x24] sm:$0xf]
    %v1555 = vld [vmem:[%s1544 + $0x28] sm:$0xf]
    %v1556 = vld [vmem:[%s1544 + $0x2c] sm:$0xf]
    %v1557 = vld [vmem:[%s1544 + $0x30] sm:$0xf]
    %v1558 = vld [vmem:[%s1544 + $0x34] sm:$0xf]
    %v1559 = vld [vmem:[%s1544 + $0x38] sm:$0xf]
    %v1560 = vld [vmem:[%s1544 + $0x3c] sm:$0xf]
    %v1561 = vperm.slane %v943, 6
    %v1578 = vunpack.c.l.b16 %v1545
    %v1579 = vunpack.c.l.b16 %v1546
    %v1580 = vunpack.c.l.b16 %v1547
    %v1581 = vunpack.c.l.b16 %v1548
    %v1582 = vunpack.c.l.b16 %v1549
    %v1583 = vunpack.c.l.b16 %v1550
    %v1584 = vunpack.c.l.b16 %v1551
    %v1585 = vunpack.c.l.b16 %v1552
    %v1586 = vunpack.c.l.b16 %v1553
    %v1587 = vunpack.c.l.b16 %v1554
    %v1588 = vunpack.c.l.b16 %v1555
    %v1589 = vunpack.c.l.b16 %v1556
    %v1590 = vunpack.c.l.b16 %v1557
    %v1591 = vunpack.c.l.b16 %v1558
    %v1592 = vunpack.c.l.b16 %v1559
    %v1593 = vunpack.c.l.b16 %v1560
    %v1594 = vpack.c.b16 %v1579, %v1578
    %v1595 = vpack.c.b16 %v1581, %v1580
    %v1596 = vpack.c.b16 %v1583, %v1582
    %v1597 = vpack.c.b16 %v1585, %v1584
    %v1598 = vpack.c.b16 %v1587, %v1586
    %v1599 = vpack.c.b16 %v1589, %v1588
    %v1600 = vpack.c.b16 %v1591, %v1590
    %v1601 = vpack.c.b16 %v1593, %v1592
    %1610 = vmatpush.bf16.msra.mxu0 %v1601
    %1611 = vmatpush.bf16.msra.mxu0 %v1600
    %1612 = vmatpush.bf16.msra.mxu0 %v1599
    %1613 = vmatpush.bf16.msra.mxu0 %v1598
    %1614 = vmatpush.bf16.msra.mxu0 %v1597
    %1615 = vmatpush.bf16.msra.mxu0 %v1596
    %1616 = vmatpush.bf16.msra.mxu0 %v1595
    %1617 = vmatpush.bf16.msra.mxu0 %v1594
    %1618 = vmatmul.bf16.gmra.mxu0 %v1543
    %v1619 = vpop.f32.mrf.mxu0
    %v1620 = vadd.f32 %v1561, %v1619
    %v1621 = vpop.f32.mrf.mxu0
    %v1622 = vadd.f32 %v1561, %v1621
    %1623 = vdwg.mxu0
    %v1624 = vadd.f32 %v1620, %v1483
    %v1625 = vadd.f32 %v1622, %v1484
    %v1626 = vsel %vm140, %v1624, 0.0
    %1627 = vadd.xlane.f32.xlu0 %v1626
    %v1628 = vpop.xlane.xlu0 %1627
    %v1629 = vsel %vm140, %v1625, 0.0
    %1630 = vadd.xlane.f32.xlu0 %v1629
    %v1631 = vpop.xlane.xlu0 %1630
    %v1632 = vmul.f32 %v1628, %v153
    %v1633 = vmul.f32 %v1631, %v153
    %v1634 = vsub.f32 %v1624, %v1632
    %v1635 = vsub.f32 %v1625, %v1633
    %v1636 = vmul.f32 %v1634, %v1634
    %v1637 = vmul.f32 %v1635, %v1635
    %v1638 = vsel %vm140, %v1636, 0.0
    %1639 = vadd.xlane.f32.xlu0 %v1638
    %v1640 = vpop.xlane.xlu0 %1639
    %v1641 = vsel %vm140, %v1637, 0.0
    %1642 = vadd.xlane.f32.xlu0 %v1641
    %v1643 = vpop.xlane.xlu0 %1642
    %v1644 = vmul.f32 %v1640, %v153
    %v1645 = vmul.f32 %v1643, %v153
    %v1646 = vadd.f32 %v1644, 1e-12
    %v1647 = vadd.f32 %v1645, 1e-12
    %v1648 = vrsqrt.pop %v1646
    %v1649 = vmul.f32 %v1648, %v1646
    %v1650 = vmul.f32 %v1649, %v1648
    %v1651 = vmul.f32 0.5, %v1650
    %v1652 = vsub.f32 1.5, %v1651
    %v1653 = vmul.f32 %v1648, %v1652
    %vm1654 = vweird.f32 %v1646
    %vm1655 = vweird.f32 %v1648
    %vm1656 = vmor %vm1654, %vm1655
    %v1657 = vsel %vm1656, %v1648, %v1653
    %v1658 = vrsqrt.pop %v1647
    %v1659 = vmul.f32 %v1658, %v1647
    %v1660 = vmul.f32 %v1659, %v1658
    %v1661 = vmul.f32 0.5, %v1660
    %v1662 = vsub.f32 1.5, %v1661
    %v1663 = vmul.f32 %v1658, %v1662
    %vm1664 = vweird.f32 %v1647
    %vm1665 = vweird.f32 %v1658
    %vm1666 = vmor %vm1664, %vm1665
    %v1667 = vsel %vm1666, %v1658, %v1663
    %v1668 = vmul.f32 %v1634, %v1657
    %v1669 = vmul.f32 %v1635, %v1667
    %v1670 = vperm.slane %v943, 7
    %v1671 = vmul.f32 %v1668, %v1670
    %v1672 = vmul.f32 %v1669, %v1670
    %v1673 = vperm.slane %v944, 0
    %v1674 = vadd.f32 %v1671, %v1673
    %v1675 = vadd.f32 %v1672, %v1673
    %1676 = vst.msk [vmem:[#allocation2] sm:$0xff] %vm140, %v1674
    %1677 = vst.msk [vmem:[#allocation2 + $0x8] sm:$0xff] %vm140, %v1675
    %v1678 = vld [vmem:[#allocation2] ss:$8 sm:$0x3]
    %v1679 = vpack.c.bf16 %v1678, %v1678
    %v1680 = vld [vmem:[%s10] sm:$0xf]
    %v1681 = vld [vmem:[%s10 + $0x4] sm:$0xf]
    %v1682 = vld [vmem:[%s10 + $0x8] sm:$0xf]
    %v1683 = vld [vmem:[%s10 + $0xc] sm:$0xf]
    %v1684 = vld [vmem:[%s11] sm:$0x1]
    %v1686 = vperm.slane %v1684, 0
    %v1692 = vunpack.c.l.b16 %v1680
    %v1693 = vunpack.c.l.b16 %v1681
    %v1694 = vunpack.c.l.b16 %v1682
    %v1695 = vunpack.c.l.b16 %v1683
    %v1696 = vpack.c.b16 %v1693, %v1692
    %v1697 = vpack.c.b16 %v1695, %v1694
    %v1701 = vsel %vm140, %v1679, 0
    %1703 = vmatpush.bf16.msra.mxu0 0
    %1704 = vmatpush.bf16.msra.mxu0 0
    %1705 = vmatpush.bf16.msra.mxu0 0
    %1706 = vmatpush.bf16.msra.mxu0 0
    %1707 = vmatpush.bf16.msra.mxu0 0
    %1708 = vmatpush.bf16.msra.mxu0 0
    %1709 = vmatpush.bf16.msra.mxu0 %v1697
    %1710 = vmatpush.bf16.msra.mxu0 %v1696
    %1711 = vmatmul.bf16.gmra.mxu0 %v1701
    %v1712 = vpop.f32.mrf.mxu0
    %v1713 = vadd.f32 %v1686, %v1712
    %v1714 = vpop.f32.mrf.mxu0
    %1715 = vdwg.mxu0
    %1716 = vst [vmem:[#allocation3] sm:$0x3] %v1713
    // Predicated region
    $region50: #{tpu_custom_call.1} parent=1 // pred_check
      _
    $region51: #{tpu_custom_call.1} parent=1 // pred_check_branch
      %1718 = sbr.rel (0) target = $region53
    $region52: #{tpu_custom_call.1} parent=1 // pred_region
      %1720 = vsyncadd [#allocation4], 0
      %s1722 = sshll.u32 [#allocation3], 4
      %s1723 = int_to_ptr.vmem [resolvable:$true] %s1722
      %s1724 = sshll.u32 %s12, 4
      %s1725 = int_to_ptr.hbm [resolvable:$true] %s1724
      %1727 = dma.vmem_to_hbm [thread:$0]  %s1723, 32, %s1725, [#allocation4]
    $region53: #{tpu_custom_call.1} parent=1 // pred_fallthru
      _
    // Predicated region
    $region54: #{tpu_custom_call.1} parent=1 // pred_check
      _
    $region55: #{tpu_custom_call.1} parent=1 // pred_check_branch
      %1729 = sbr.rel (0) target = $region57
    $region56: #{tpu_custom_call.1} parent=1 // pred_region
      %1731 = dma.done [#allocation4], 32
    $region57: #{tpu_custom_call.1} parent=1 // pred_fallthru
      _
    %1732 = vsyncpa [#allocation4], 1

</llo_original>
